<compile_context>
chip_gen: v7x
topology: tpu7x:2x2x1
jax: 0.10.0
libtpu: 0.0.40
codegen_flags: <defaults>
</compile_context>

<pallas_src>
import functools

import jax
import jax.numpy as jnp
import numpy as np
from jax import lax
from jax.experimental import pallas as pl
from jax.experimental.pallas import tpu as pltpu

Z_DIM = 32
HID = 4 * Z_DIM            # 128
IN_DIM = 28 * 28           # 784
BN_EPS = 1e-5
SLOPE = 0.2


def _round_up(v, m):
    return ((v + m - 1) // m) * m


# ----------------------------- kernel helpers -----------------------------

def _leaky_relu(h):
    # SLOPE < 1  ->  max(h, SLOPE*h) == LeakyReLU(SLOPE)(h); one VALU op.
    return jnp.maximum(h, SLOPE * h)


def _row_mask(tb, n_valid):
    """(tb,1) bool mask: True for rows that belong to the real (unpadded) batch."""
    rows = pl.program_id(0) * tb + lax.broadcasted_iota(jnp.int32, (tb, 1), 0)
    return rows < n_valid


def _partial_stats(h, mask):
    """(2, HID): row 0 = masked sum, row 1 = masked sum of squares (single store)."""
    hm = jnp.where(mask, h, 0.0)
    return jnp.concatenate(
        [jnp.sum(hm, axis=0, keepdims=True),
         jnp.sum(hm * hm, axis=0, keepdims=True)], axis=0)


def _bn_fold(ps, gamma, beta, n):
    """Fold raw per-tile (sum, sumsq) partials into BN scale/shift, in-kernel.

    ps: (nt, 2, HID) f32, gamma/beta: (1, HID), n: scalar f32 (real batch size).
    rsqrt goes to the EUP slot; the reduce is ~nt*256 VPU adds -> negligible.
    """
    s = jnp.sum(ps[:, 0:1, :], axis=0)       # (1, HID)
    ss = jnp.sum(ps[:, 1:2, :], axis=0)      # (1, HID)
    mean = s / n
    var = ss / n - mean * mean               # biased batch variance (training mode)
    scale = gamma * lax.rsqrt(var + BN_EPS)
    shift = beta - mean * scale
    return scale, shift


# ------------------------------- kernels ----------------------------------

def _stage_a_kernel(nb_ref, x_ref, w1_ref, h1_ref, ps_ref):
    # enc_layer1 Linear (bias dropped: cancelled by the following BatchNorm).
    tb = x_ref.shape[0]
    h = jnp.dot(x_ref[...], w1_ref[...], preferred_element_type=jnp.float32)
    h1_ref[...] = h.astype(h1_ref.dtype)
    ps_ref[...] = _partial_stats(h, _row_mask(tb, nb_ref[0]))


def _stage_b_kernel(nb_ref, h1_ref, eps1_ref, ps1_ref, vec_ref, wb_ref,
                    h2_ref, ps2_ref):
    tb = h1_ref.shape[0]
    n = nb_ref[0].astype(jnp.float32)
    scale, shift = _bn_fold(ps1_ref[...], vec_ref[0:1, :], vec_ref[1:2, :], n)
    # BN1 + LeakyReLU(0.2)
    a = _leaky_relu(h1_ref[...].astype(jnp.float32) * scale + shift)
    # (a + eps1@Wn1 + bn1) @ W2  ==  [a, eps1] @ [[W2],[Wn1@W2]] + bn1@W2
    lhs = jnp.concatenate([a.astype(jnp.bfloat16), eps1_ref[...]], axis=1)
    h2 = jnp.dot(lhs, wb_ref[...], preferred_element_type=jnp.float32) + vec_ref[2:3, :]
    h2_ref[...] = h2.astype(h2_ref.dtype)
    ps2_ref[...] = _partial_stats(h2, _row_mask(tb, nb_ref[0]))


def _stage_c_kernel(nb_ref, h2_ref, eps2_ref, ps2_ref, vec_ref, wc_ref, out_ref):
    n = nb_ref[0].astype(jnp.float32)
    scale, shift = _bn_fold(ps2_ref[...], vec_ref[0:1, :], vec_ref[1:2, :], n)
    # BN2 + LeakyReLU(0.2)
    a = _leaky_relu(h2_ref[...].astype(jnp.float32) * scale + shift)
    # (a + eps2@Wn2 + bn2) @ Wfc + bfc  ==  [a, eps2] @ [[Wfc],[Wn2@Wfc]] + (bn2@Wfc + bfc)
    lhs = jnp.concatenate([a.astype(jnp.bfloat16), eps2_ref[...]], axis=1)
    out_ref[...] = (jnp.dot(lhs, wc_ref[...], preferred_element_type=jnp.float32)
                    + vec_ref[2:3, :])


# ------------------------------ host wrapper -------------------------------

def _pick_tb(b, cap):
    """Batch tile: multiple of 8, capped, and (when possible) >= 2 grid steps
    so both v7x TensorCores get work under dimension_semantics=("parallel",)."""
    cap = max(8, _round_up(cap, 8))
    if b <= 8:
        return 8
    return min(cap, _round_up((b + 1) // 2, 8))


@functools.partial(jax.jit, static_argnames=("block_b",))
def encoder_forward(x, params, eps1, eps2, *, block_b=1024):
    B = x.shape[0]
    x2 = x.reshape(B, IN_DIM).astype(jnp.bfloat16)
    e1 = eps1.astype(jnp.bfloat16)
    e2 = eps2.astype(jnp.bfloat16)

    # Stage-A tile (x is 784 wide -> ~1.6 MiB/tile at tb=1024 in bf16).
    tb_a = _pick_tb(B, block_b)
    bp = _round_up(B, tb_a)
    nt_a = bp // tb_a
    pad = bp - B

    # Stage B/C move far fewer bytes per row; use a bigger tile (<= 2048) that
    # still divides the padded batch and keeps >= 2 grid steps when possible.
    tb_bc = tb_a
    if nt_a >= 2:
        for d in range(2, nt_a + 1):
            if nt_a % d == 0 and bp // d <= 2048:
                tb_bc = bp // d
                break
    nt_bc = bp // tb_bc

    if pad:
        x2 = jnp.pad(x2, ((0, pad), (0, 0)))
        e1 = jnp.pad(e1, ((0, pad), (0, 0)))
        e2 = jnp.pad(e2, ((0, pad), (0, 0)))

    nb = jnp.full((1,), B, dtype=jnp.int32)     # real batch size -> SMEM scalar

    cparams = pltpu.CompilerParams(
        dimension_semantics=("parallel",),
        vmem_limit_bytes=32 * 1024 * 1024,
    )
    smem_spec = pl.BlockSpec(memory_space=pltpu.MemorySpace.SMEM)

    # ---------------- Stage A: h1 = x @ W1 + per-tile batch stats ----------------
    h1, ps1 = pl.pallas_call(
        _stage_a_kernel,
        grid=(nt_a,),
        in_specs=[
            smem_spec,                                          # real batch size
            pl.BlockSpec((tb_a, IN_DIM), lambda i: (i, 0)),     # x tile (bf16)
            pl.BlockSpec((IN_DIM, HID), lambda i: (0, 0)),      # W1 resident (bf16)
        ],
        out_specs=(
            pl.BlockSpec((tb_a, HID), lambda i: (i, 0)),        # h1 tile (bf16)
            pl.BlockSpec((None, 2, HID), lambda i: (i, 0, 0)),  # per-tile stats (f32)
        ),
        out_shape=(
            jax.ShapeDtypeStruct((bp, HID), jnp.bfloat16),
            jax.ShapeDtypeStruct((nt_a, 2, HID), jnp.float32),
        ),
        compiler_params=cparams,
        cost_estimate=pl.CostEstimate(
            flops=2 * bp * IN_DIM * HID,
            transcendentals=0,
            bytes_accessed=2 * (bp * IN_DIM + IN_DIM * HID + bp * HID)
                           + 4 * nt_a * 2 * HID),
    )(nb, x2, params["w1"])

    # ---- Stage B: in-kernel BN1 fold + LReLU, folded noise path, h2 + stats ----
    h2, ps2 = pl.pallas_call(
        _stage_b_kernel,
        grid=(nt_bc,),
        in_specs=[
            smem_spec,
            pl.BlockSpec((tb_bc, HID), lambda i: (i, 0)),       # h1 tile (bf16)
            pl.BlockSpec((tb_bc, HID), lambda i: (i, 0)),       # eps1 tile (bf16)
            pl.BlockSpec((nt_a, 2, HID), lambda i: (0, 0, 0)),  # raw BN1 partials
            pl.BlockSpec((3, HID), lambda i: (0, 0)),           # gamma1, beta1, bn1@W2
            pl.BlockSpec((2 * HID, HID), lambda i: (0, 0)),     # [W2; Wn1@W2] resident
        ],
        out_specs=(
            pl.BlockSpec((tb_bc, HID), lambda i: (i, 0)),
            pl.BlockSpec((None, 2, HID), lambda i: (i, 0, 0)),
        ),
        out_shape=(
            jax.ShapeDtypeStruct((bp, HID), jnp.bfloat16),
            jax.ShapeDtypeStruct((nt_bc, 2, HID), jnp.float32),
        ),
        compiler_params=cparams,
        cost_estimate=pl.CostEstimate(
            flops=2 * bp * (2 * HID) * HID + 12 * bp * HID,
            transcendentals=HID,
            bytes_accessed=2 * (3 * bp * HID + 2 * HID * HID)
                           + 4 * ((nt_a + nt_bc) * 2 * HID + 3 * HID)),
    )(nb, h1, e1, ps1, params["vb"], params["wb"])

    # ------ Stage C: in-kernel BN2 fold + LReLU, folded noise path, output ------
    out_p = pl.pallas_call(
        _stage_c_kernel,
        grid=(nt_bc,),
        in_specs=[
            smem_spec,
            pl.BlockSpec((tb_bc, HID), lambda i: (i, 0)),       # h2 tile (bf16)
            pl.BlockSpec((tb_bc, HID), lambda i: (i, 0)),       # eps2 tile (bf16)
            pl.BlockSpec((nt_bc, 2, HID), lambda i: (0, 0, 0)), # raw BN2 partials
            pl.BlockSpec((3, HID), lambda i: (0, 0)),           # gamma2, beta2, bias_c
            pl.BlockSpec((2 * HID, HID), lambda i: (0, 0)),     # [Wfc_p; Wn2@Wfc_p]
        ],
        out_specs=pl.BlockSpec((tb_bc, HID), lambda i: (i, 0)), # lane-dense padded out
        out_shape=jax.ShapeDtypeStruct((bp, HID), jnp.float32),
        compiler_params=cparams,
        cost_estimate=pl.CostEstimate(
            flops=2 * bp * (2 * HID) * HID + 12 * bp * HID,
            transcendentals=HID,
            bytes_accessed=2 * (2 * bp * HID + 2 * HID * HID)
                           + 4 * (bp * HID + nt_bc * 2 * HID + 3 * HID)),
    )(nb, h2, e2, ps2, params["vc"], params["wc"])

    return out_p[:B, :Z_DIM]


# ------------------------- params & pure-JAX reference ---------------------

def init_params(key):
    """Mimics utils.initialize_weights: Linear W ~ N(0, 0.02), biases = 0
    (pre-BN Linear biases are omitted entirely -- zero-init and exactly cancelled
    by the BatchNorm mean subtraction); BN gamma ~ N(1, 0.02), beta = 0."""
    ks = jax.random.split(key, 8)
    return {
        "w1":  0.02 * jax.random.normal(ks[0], (IN_DIM, HID), jnp.float32),
        "g1":  1.0 + 0.02 * jax.random.normal(ks[1], (HID,), jnp.float32),
        "be1": jnp.zeros((HID,), jnp.float32),
        "wn1": 0.02 * jax.random.normal(ks[2], (HID, HID), jnp.float32),
        "bn1": jnp.zeros((HID,), jnp.float32),
        "w2":  0.02 * jax.random.normal(ks[3], (HID, HID), jnp.float32),
        "g2":  1.0 + 0.02 * jax.random.normal(ks[4], (HID,), jnp.float32),
        "be2": jnp.zeros((HID,), jnp.float32),
        "wn2": 0.02 * jax.random.normal(ks[5], (HID, HID), jnp.float32),
        "bn2": jnp.zeros((HID,), jnp.float32),
        "wfc": 0.02 * jax.random.normal(ks[6], (HID, Z_DIM), jnp.float32),
        "bfc": jnp.zeros((Z_DIM,), jnp.float32),
    }


def prepare_params(p):
    """One-time preprocessing (hoisted out of the per-forward path):
    pad Wfc to lane-dense (128,128), fold the noise-path weights into the next
    matmul ([W2; Wn1@W2], [Wfc; Wn2@Wfc]), pack the tiny per-feature vectors,
    and cast the matmul weights to bf16 (accumulation stays f32 in-kernel)."""
    wfc_p = jnp.zeros((HID, HID), jnp.float32).at[:, :Z_DIM].set(p["wfc"])
    bfc_p = jnp.zeros((HID,), jnp.float32).at[:Z_DIM].set(p["bfc"])
    wb = jnp.concatenate([p["w2"], p["wn1"] @ p["w2"]], axis=0)      # (256, 128)
    wc = jnp.concatenate([wfc_p, p["wn2"] @ wfc_p], axis=0)          # (256, 128)
    bias_b = p["bn1"] @ p["w2"]                                      # (128,)
    bias_c = p["bn2"] @ wfc_p + bfc_p                                # (128,)
    return {
        "w1": p["w1"].astype(jnp.bfloat16),
        "wb": wb.astype(jnp.bfloat16),
        "wc": wc.astype(jnp.bfloat16),
        "vb": jnp.stack([p["g1"], p["be1"], bias_b], axis=0),        # (3, 128) f32
        "vc": jnp.stack([p["g2"], p["be2"], bias_c], axis=0),        # (3, 128) f32
    }


def _bn_lrelu_ref(h, gamma, beta):
    mean = jnp.mean(h, axis=0, keepdims=True)
    var = jnp.mean((h - mean) ** 2, axis=0, keepdims=True)
    hn = (h - mean) * lax.rsqrt(var + BN_EPS) * gamma + beta
    return jnp.where(hn >= 0, hn, SLOPE * hn)


def encoder_ref(x, p, eps1, eps2):
    """Pure-JAX f32 reference of the same forward (correctness check)."""
    h = x.reshape(x.shape[0], IN_DIM) @ p["w1"]
    h = _bn_lrelu_ref(h, p["g1"], p["be1"])
    h = h + eps1 @ p["wn1"] + p["bn1"]
    h = h @ p["w2"]
    h = _bn_lrelu_ref(h, p["g2"], p["be2"])
    h = h + eps2 @ p["wn2"] + p["bn2"]
    return h @ p["wfc"] + p["bfc"]


if __name__ == "__main__":
    key = jax.random.PRNGKey(0)
    k_x, k_p, k_e1, k_e2 = jax.random.split(key, 4)

    B = 20                                     # deliberately not a multiple of the tile
    x = jax.random.normal(k_x, (B, 1, 28, 28), jnp.float32)   # NCHW like PyTorch
    raw = init_params(k_p)
    params = prepare_params(raw)
    eps1 = jax.random.normal(k_e1, (B, HID), jnp.float32)     # torch.randn(x.size())
    eps2 = jax.random.normal(k_e2, (B, HID), jnp.float32)

    # block_b=16 -> 2 batch tiles, last one partially masked out of the BN stats.
    out = encoder_forward(x, params, eps1, eps2, block_b=16)
    out = jax.block_until_ready(out)

    ref = encoder_ref(x, raw, eps1, eps2)
    # bf16 inputs / inter-stage activations -> relaxed tolerance vs the f32 reference.
    np.testing.assert_allclose(np.asarray(out), np.asarray(ref), rtol=2e-2, atol=2e-2)
    assert out.shape == (B, Z_DIM)
    print("KERNEL_OK")
</pallas_src>

<mosaic_0001>
module attributes {stable_mosaic.version = 11 : i64} {
  func.func @_stage_a_kernel(%arg0: i32, %arg1: memref<1xi32, #tpu.memory_space<smem>>, %arg2: memref<16x784xbf16, #tpu.memory_space<vmem>>, %arg3: memref<784x128xbf16, #tpu.memory_space<vmem>>, %arg4: memref<16x128xbf16, #tpu.memory_space<vmem>>, %arg5: memref<1x2x128xf32, #tpu.memory_space<vmem>>) attributes {dimension_semantics = [#tpu.dimension_semantics<parallel>], iteration_bounds = array<i64: 2>, scalar_prefetch = 0 : i64, scratch_operands = 0 : i64, tpu.core_type = #tpu.core_type<tc>, window_params = [{transform_indices = @transform_0, window_bounds = array<i64: 1>}, {transform_indices = @transform_1, window_bounds = array<i64: 16, 784>}, {pipeline_mode = #tpu.pipeline_mode<synchronous>, transform_indices = @transform_2, window_bounds = array<i64: 784, 128>}, {transform_indices = @transform_3, window_bounds = array<i64: 16, 128>}, {transform_indices = @transform_4, window_bounds = array<i64: 1, 2, 128>}]} {
    %c0 = arith.constant 0 : index
    %c0_0 = arith.constant 0 : index
    %0 = vector.load %arg2[%c0, %c0_0] : memref<16x784xbf16, #tpu.memory_space<vmem>>, vector<16x784xbf16>
    %c0_1 = arith.constant 0 : index
    %c0_2 = arith.constant 0 : index
    %1 = vector.load %arg3[%c0_1, %c0_2] : memref<784x128xbf16, #tpu.memory_space<vmem>>, vector<784x128xbf16>
    %cst = arith.constant dense<0.000000e+00> : vector<16x128xf32>
    %2 = tpu.matmul %0, %1, %cst {dimension_numbers = #tpu.dot_dimension_numbers<[1], [0], [0], [1], [0, 0, 1, 1], [], []>} : vector<16x784xbf16>, vector<784x128xbf16>, vector<16x128xf32> -> vector<16x128xf32>
    %3 = arith.truncf %2 : vector<16x128xf32> to vector<16x128xbf16>
    %c0_3 = arith.constant 0 : index
    %c0_4 = arith.constant 0 : index
    %4 = vector.load %arg4[%c0_3, %c0_4] : memref<16x128xbf16, #tpu.memory_space<vmem>>, vector<16x128xbf16>
    tpu.vector_store %arg4[%c0_3, %c0_4], %3 {strides = array<i32>} : memref<16x128xbf16, #tpu.memory_space<vmem>>, vector<16x128xbf16>,
    %c0_5 = arith.constant 0 : index
    %5 = memref.load %arg1[%c0_5] : memref<1xi32, #tpu.memory_space<smem>>
    %c16_i32 = arith.constant 16 : i32
    %6 = arith.muli %arg0, %c16_i32 : i32
    %7 = tpu.iota {dimensions = array<i32: 0>} : vector<16x1xi32>
    %8 = vector.broadcast %6 : i32 to vector<16x1xi32>
    %9 = arith.addi %8, %7 : vector<16x1xi32>
    %10 = vector.broadcast %5 : i32 to vector<16x1xi32>
    %11 = arith.cmpi slt, %9, %10 : vector<16x1xi32>
    %cst_6 = arith.constant 0.000000e+00 : f32
    %12 = vector.shape_cast %11 : vector<16x1xi1> to vector<16x1xi1>
    %13 = vector.broadcast %12 : vector<16x1xi1> to vector<16x128xi1>
    %14 = vector.broadcast %cst_6 : f32 to vector<16x128xf32>
    %15 = arith.select %13, %2, %14 : vector<16x128xi1>, vector<16x128xf32>
    %cst_7 = arith.constant dense<0.000000e+00> : vector<128xf32>
    %16 = vector.multi_reduction <add>, %15, %cst_7 [0] : vector<16x128xf32> to vector<128xf32>
    %17 = vector.shape_cast %16 : vector<128xf32> to vector<1x128xf32>
    %18 = arith.mulf %15, %15 : vector<16x128xf32>
    %cst_8 = arith.constant dense<0.000000e+00> : vector<128xf32>
    %19 = vector.multi_reduction <add>, %18, %cst_8 [0] : vector<16x128xf32> to vector<128xf32>
    %20 = vector.shape_cast %19 : vector<128xf32> to vector<1x128xf32>
    %21 = tpu.concatenate %17, %20 in 0 : vector<1x128xf32>, vector<1x128xf32> -> vector<2x128xf32>
    %c0_9 = arith.constant 0 : index
    %c0_10 = arith.constant 0 : index
    %c0_11 = arith.constant 0 : index
    %22 = vector.load %arg5[%c0_9, %c0_10, %c0_11] : memref<1x2x128xf32, #tpu.memory_space<vmem>>, vector<1x2x128xf32>
    %23 = vector.shape_cast %22 : vector<1x2x128xf32> to vector<2x128xf32>
    %24 = vector.shape_cast %21 : vector<2x128xf32> to vector<1x2x128xf32>
    tpu.vector_store %arg5[%c0_9, %c0_10, %c0_11], %24 {strides = array<i32>} : memref<1x2x128xf32, #tpu.memory_space<vmem>>, vector<1x2x128xf32>,
    return
  }
  func.func @transform_0(%arg0: i32) -> i32 {
    %c0_i32 = arith.constant 0 : i32
    %c0_i32_0 = arith.constant 0 : i32
    return %c0_i32 : i32
  }
  func.func @transform_1(%arg0: i32) -> (i32, i32) {
    %c0_i32 = arith.constant 0 : i32
    %c0_i32_0 = arith.constant 0 : i32
    return %arg0, %c0_i32 : i32, i32
  }
  func.func @transform_2(%arg0: i32) -> (i32, i32) {
    %c0_i32 = arith.constant 0 : i32
    %c0_i32_0 = arith.constant 0 : i32
    %c0_i32_1 = arith.constant 0 : i32
    return %c0_i32, %c0_i32_0 : i32, i32
  }
  func.func @transform_3(%arg0: i32) -> (i32, i32) {
    %c0_i32 = arith.constant 0 : i32
    %c0_i32_0 = arith.constant 0 : i32
    return %arg0, %c0_i32 : i32, i32
  }
  func.func @transform_4(%arg0: i32) -> (i32, i32, i32) {
    %c0_i32 = arith.constant 0 : i32
    %c0_i32_0 = arith.constant 0 : i32
    %c0_i32_1 = arith.constant 0 : i32
    return %arg0, %c0_i32, %c0_i32_0 : i32, i32, i32
  }
}

module attributes {stable_mosaic.version = 11 : i64} {
  func.func @_stage_b_kernel(%arg0: i32, %arg1: memref<1xi32, #tpu.memory_space<smem>>, %arg2: memref<16x128xbf16, #tpu.memory_space<vmem>>, %arg3: memref<16x128xbf16, #tpu.memory_space<vmem>>, %arg4: memref<2x2x128xf32, #tpu.memory_space<vmem>>, %arg5: memref<3x128xf32, #tpu.memory_space<vmem>>, %arg6: memref<256x128xbf16, #tpu.memory_space<vmem>>, %arg7: memref<16x128xbf16, #tpu.memory_space<vmem>>, %arg8: memref<1x2x128xf32, #tpu.memory_space<vmem>>) attributes {dimension_semantics = [#tpu.dimension_semantics<parallel>], iteration_bounds = array<i64: 2>, scalar_prefetch = 0 : i64, scratch_operands = 0 : i64, tpu.core_type = #tpu.core_type<tc>, window_params = [{transform_indices = @transform_0, window_bounds = array<i64: 1>}, {transform_indices = @transform_1, window_bounds = array<i64: 16, 128>}, {transform_indices = @transform_2, window_bounds = array<i64: 16, 128>}, {pipeline_mode = #tpu.pipeline_mode<synchronous>, transform_indices = @transform_3, window_bounds = array<i64: 2, 2, 128>}, {pipeline_mode = #tpu.pipeline_mode<synchronous>, transform_indices = @transform_4, window_bounds = array<i64: 3, 128>}, {pipeline_mode = #tpu.pipeline_mode<synchronous>, transform_indices = @transform_5, window_bounds = array<i64: 256, 128>}, {transform_indices = @transform_6, window_bounds = array<i64: 16, 128>}, {transform_indices = @transform_7, window_bounds = array<i64: 1, 2, 128>}]} {
    %c0 = arith.constant 0 : index
    %0 = memref.load %arg1[%c0] : memref<1xi32, #tpu.memory_space<smem>>
    %1 = arith.sitofp %0 : i32 to f32
    %c0_0 = arith.constant 0 : index
    %c0_1 = arith.constant 0 : index
    %c0_2 = arith.constant 0 : index
    %2 = vector.load %arg4[%c0_0, %c0_1, %c0_2] : memref<2x2x128xf32, #tpu.memory_space<vmem>>, vector<2x2x128xf32>
    %c0_3 = arith.constant 0 : index
    %c0_4 = arith.constant 0 : index
    %3 = vector.load %arg5[%c0_3, %c0_4] : memref<3x128xf32, #tpu.memory_space<vmem>>, vector<1x128xf32>
    %c1 = arith.constant 1 : index
    %c0_5 = arith.constant 0 : index
    %4 = vector.load %arg5[%c1, %c0_5] : memref<3x128xf32, #tpu.memory_space<vmem>>, vector<1x128xf32>
    %5 = vector.extract_strided_slice %2 {offsets = [0, 0, 0], sizes = [2, 1, 128], strides = [1, 1, 1]} : vector<2x2x128xf32> to vector<2x1x128xf32>
    %cst = arith.constant dense<0.000000e+00> : vector<1x128xf32>
    %6 = vector.multi_reduction <add>, %5, %cst [0] : vector<2x1x128xf32> to vector<1x128xf32>
    %7 = vector.extract_strided_slice %2 {offsets = [0, 1, 0], sizes = [2, 1, 128], strides = [1, 1, 1]} : vector<2x2x128xf32> to vector<2x1x128xf32>
    %cst_6 = arith.constant dense<0.000000e+00> : vector<1x128xf32>
    %8 = vector.multi_reduction <add>, %7, %cst_6 [0] : vector<2x1x128xf32> to vector<1x128xf32>
    %9 = vector.broadcast %1 : f32 to vector<1x128xf32>
    %10 = arith.divf %6, %9 : vector<1x128xf32>
    %11 = vector.broadcast %1 : f32 to vector<1x128xf32>
    %12 = arith.divf %8, %11 : vector<1x128xf32>
    %13 = arith.mulf %10, %10 : vector<1x128xf32>
    %14 = arith.subf %12, %13 : vector<1x128xf32>
    %cst_7 = arith.constant 9.99999974E-6 : f32
    %15 = vector.broadcast %cst_7 : f32 to vector<1x128xf32>
    %16 = arith.addf %14, %15 : vector<1x128xf32>
    %17 = math.rsqrt %16 : vector<1x128xf32>
    %18 = arith.mulf %3, %17 : vector<1x128xf32>
    %19 = arith.mulf %10, %18 : vector<1x128xf32>
    %20 = arith.subf %4, %19 : vector<1x128xf32>
    %c0_8 = arith.constant 0 : index
    %c0_9 = arith.constant 0 : index
    %21 = vector.load %arg2[%c0_8, %c0_9] : memref<16x128xbf16, #tpu.memory_space<vmem>>, vector<16x128xbf16>
    %22 = arith.extf %21 : vector<16x128xbf16> to vector<16x128xf32>
    %23 = vector.broadcast %18 : vector<1x128xf32> to vector<16x128xf32>
    %24 = arith.mulf %22, %23 : vector<16x128xf32>
    %25 = vector.broadcast %20 : vector<1x128xf32> to vector<16x128xf32>
    %26 = arith.addf %24, %25 : vector<16x128xf32>
    %cst_10 = arith.constant 2.000000e-01 : f32
    %27 = vector.broadcast %cst_10 : f32 to vector<16x128xf32>
    %28 = arith.mulf %27, %26 : vector<16x128xf32>
    %29 = arith.maximumf %26, %28 : vector<16x128xf32>
    %30 = arith.truncf %29 : vector<16x128xf32> to vector<16x128xbf16>
    %c0_11 = arith.constant 0 : index
    %c0_12 = arith.constant 0 : index
    %31 = vector.load %arg3[%c0_11, %c0_12] : memref<16x128xbf16, #tpu.memory_space<vmem>>, vector<16x128xbf16>
    %32 = tpu.concatenate %30, %31 in 1 : vector<16x128xbf16>, vector<16x128xbf16> -> vector<16x256xbf16>
    %c0_13 = arith.constant 0 : index
    %c0_14 = arith.constant 0 : index
    %33 = vector.load %arg6[%c0_13, %c0_14] : memref<256x128xbf16, #tpu.memory_space<vmem>>, vector<256x128xbf16>
    %cst_15 = arith.constant dense<0.000000e+00> : vector<16x128xf32>
    %34 = tpu.matmul %32, %33, %cst_15 {dimension_numbers = #tpu.dot_dimension_numbers<[1], [0], [0], [1], [0, 0, 1, 1], [], []>} : vector<16x256xbf16>, vector<256x128xbf16>, vector<16x128xf32> -> vector<16x128xf32>
    %c2 = arith.constant 2 : index
    %c0_16 = arith.constant 0 : index
    %35 = vector.load %arg5[%c2, %c0_16] : memref<3x128xf32, #tpu.memory_space<vmem>>, vector<1x128xf32>
    %36 = vector.broadcast %35 : vector<1x128xf32> to vector<16x128xf32>
    %37 = arith.addf %34, %36 : vector<16x128xf32>
    %38 = arith.truncf %37 : vector<16x128xf32> to vector<16x128xbf16>
    %c0_17 = arith.constant 0 : index
    %c0_18 = arith.constant 0 : index
    %39 = vector.load %arg7[%c0_17, %c0_18] : memref<16x128xbf16, #tpu.memory_space<vmem>>, vector<16x128xbf16>
    tpu.vector_store %arg7[%c0_17, %c0_18], %38 {strides = array<i32>} : memref<16x128xbf16, #tpu.memory_space<vmem>>, vector<16x128xbf16>,
    %c0_19 = arith.constant 0 : index
    %40 = memref.load %arg1[%c0_19] : memref<1xi32, #tpu.memory_space<smem>>
    %c16_i32 = arith.constant 16 : i32
    %41 = arith.muli %arg0, %c16_i32 : i32
    %42 = tpu.iota {dimensions = array<i32: 0>} : vector<16x1xi32>
    %43 = vector.broadcast %41 : i32 to vector<16x1xi32>
    %44 = arith.addi %43, %42 : vector<16x1xi32>
    %45 = vector.broadcast %40 : i32 to vector<16x1xi32>
    %46 = arith.cmpi slt, %44, %45 : vector<16x1xi32>
    %cst_20 = arith.constant 0.000000e+00 : f32
    %47 = vector.shape_cast %46 : vector<16x1xi1> to vector<16x1xi1>
    %48 = vector.broadcast %47 : vector<16x1xi1> to vector<16x128xi1>
    %49 = vector.broadcast %cst_20 : f32 to vector<16x128xf32>
    %50 = arith.select %48, %37, %49 : vector<16x128xi1>, vector<16x128xf32>
    %cst_21 = arith.constant dense<0.000000e+00> : vector<128xf32>
    %51 = vector.multi_reduction <add>, %50, %cst_21 [0] : vector<16x128xf32> to vector<128xf32>
    %52 = vector.shape_cast %51 : vector<128xf32> to vector<1x128xf32>
    %53 = arith.mulf %50, %50 : vector<16x128xf32>
    %cst_22 = arith.constant dense<0.000000e+00> : vector<128xf32>
    %54 = vector.multi_reduction <add>, %53, %cst_22 [0] : vector<16x128xf32> to vector<128xf32>
    %55 = vector.shape_cast %54 : vector<128xf32> to vector<1x128xf32>
    %56 = tpu.concatenate %52, %55 in 0 : vector<1x128xf32>, vector<1x128xf32> -> vector<2x128xf32>
    %c0_23 = arith.constant 0 : index
    %c0_24 = arith.constant 0 : index
    %c0_25 = arith.constant 0 : index
    %57 = vector.load %arg8[%c0_23, %c0_24, %c0_25] : memref<1x2x128xf32, #tpu.memory_space<vmem>>, vector<1x2x128xf32>
    %58 = vector.shape_cast %57 : vector<1x2x128xf32> to vector<2x128xf32>
    %59 = vector.shape_cast %56 : vector<2x128xf32> to vector<1x2x128xf32>
    tpu.vector_store %arg8[%c0_23, %c0_24, %c0_25], %59 {strides = array<i32>} : memref<1x2x128xf32, #tpu.memory_space<vmem>>, vector<1x2x128xf32>,
    return
  }
  func.func @transform_0(%arg0: i32) -> i32 {
    %c0_i32 = arith.constant 0 : i32
    %c0_i32_0 = arith.constant 0 : i32
    return %c0_i32 : i32
  }
  func.func @transform_1(%arg0: i32) -> (i32, i32) {
    %c0_i32 = arith.constant 0 : i32
    %c0_i32_0 = arith.constant 0 : i32
    return %arg0, %c0_i32 : i32, i32
  }
  func.func @transform_2(%arg0: i32) -> (i32, i32) {
    %c0_i32 = arith.constant 0 : i32
    %c0_i32_0 = arith.constant 0 : i32
    return %arg0, %c0_i32 : i32, i32
  }
  func.func @transform_3(%arg0: i32) -> (i32, i32, i32) {
    %c0_i32 = arith.constant 0 : i32
    %c0_i32_0 = arith.constant 0 : i32
    %c0_i32_1 = arith.constant 0 : i32
    %c0_i32_2 = arith.constant 0 : i32
    return %c0_i32, %c0_i32_0, %c0_i32_1 : i32, i32, i32
  }
  func.func @transform_4(%arg0: i32) -> (i32, i32) {
    %c0_i32 = arith.constant 0 : i32
    %c0_i32_0 = arith.constant 0 : i32
    %c0_i32_1 = arith.constant 0 : i32
    return %c0_i32, %c0_i32_0 : i32, i32
  }
  func.func @transform_5(%arg0: i32) -> (i32, i32) {
    %c0_i32 = arith.constant 0 : i32
    %c0_i32_0 = arith.constant 0 : i32
    %c0_i32_1 = arith.constant 0 : i32
    return %c0_i32, %c0_i32_0 : i32, i32
  }
  func.func @transform_6(%arg0: i32) -> (i32, i32) {
    %c0_i32 = arith.constant 0 : i32
    %c0_i32_0 = arith.constant 0 : i32
    return %arg0, %c0_i32 : i32, i32
  }
  func.func @transform_7(%arg0: i32) -> (i32, i32, i32) {
    %c0_i32 = arith.constant 0 : i32
    %c0_i32_0 = arith.constant 0 : i32
    %c0_i32_1 = arith.constant 0 : i32
    return %arg0, %c0_i32, %c0_i32_0 : i32, i32, i32
  }
}

module attributes {stable_mosaic.version = 11 : i64} {
  func.func @_stage_c_kernel(%arg0: i32, %arg1: memref<1xi32, #tpu.memory_space<smem>>, %arg2: memref<16x128xbf16, #tpu.memory_space<vmem>>, %arg3: memref<16x128xbf16, #tpu.memory_space<vmem>>, %arg4: memref<2x2x128xf32, #tpu.memory_space<vmem>>, %arg5: memref<3x128xf32, #tpu.memory_space<vmem>>, %arg6: memref<256x128xbf16, #tpu.memory_space<vmem>>, %arg7: memref<16x128xf32, #tpu.memory_space<vmem>>) attributes {dimension_semantics = [#tpu.dimension_semantics<parallel>], iteration_bounds = array<i64: 2>, scalar_prefetch = 0 : i64, scratch_operands = 0 : i64, tpu.core_type = #tpu.core_type<tc>, window_params = [{transform_indices = @transform_0, window_bounds = array<i64: 1>}, {transform_indices = @transform_1, window_bounds = array<i64: 16, 128>}, {transform_indices = @transform_2, window_bounds = array<i64: 16, 128>}, {pipeline_mode = #tpu.pipeline_mode<synchronous>, transform_indices = @transform_3, window_bounds = array<i64: 2, 2, 128>}, {pipeline_mode = #tpu.pipeline_mode<synchronous>, transform_indices = @transform_4, window_bounds = array<i64: 3, 128>}, {pipeline_mode = #tpu.pipeline_mode<synchronous>, transform_indices = @transform_5, window_bounds = array<i64: 256, 128>}, {transform_indices = @transform_6, window_bounds = array<i64: 16, 128>}]} {
    %c0 = arith.constant 0 : index
    %0 = memref.load %arg1[%c0] : memref<1xi32, #tpu.memory_space<smem>>
    %1 = arith.sitofp %0 : i32 to f32
    %c0_0 = arith.constant 0 : index
    %c0_1 = arith.constant 0 : index
    %c0_2 = arith.constant 0 : index
    %2 = vector.load %arg4[%c0_0, %c0_1, %c0_2] : memref<2x2x128xf32, #tpu.memory_space<vmem>>, vector<2x2x128xf32>
    %c0_3 = arith.constant 0 : index
    %c0_4 = arith.constant 0 : index
    %3 = vector.load %arg5[%c0_3, %c0_4] : memref<3x128xf32, #tpu.memory_space<vmem>>, vector<1x128xf32>
    %c1 = arith.constant 1 : index
    %c0_5 = arith.constant 0 : index
    %4 = vector.load %arg5[%c1, %c0_5] : memref<3x128xf32, #tpu.memory_space<vmem>>, vector<1x128xf32>
    %5 = vector.extract_strided_slice %2 {offsets = [0, 0, 0], sizes = [2, 1, 128], strides = [1, 1, 1]} : vector<2x2x128xf32> to vector<2x1x128xf32>
    %cst = arith.constant dense<0.000000e+00> : vector<1x128xf32>
    %6 = vector.multi_reduction <add>, %5, %cst [0] : vector<2x1x128xf32> to vector<1x128xf32>
    %7 = vector.extract_strided_slice %2 {offsets = [0, 1, 0], sizes = [2, 1, 128], strides = [1, 1, 1]} : vector<2x2x128xf32> to vector<2x1x128xf32>
    %cst_6 = arith.constant dense<0.000000e+00> : vector<1x128xf32>
    %8 = vector.multi_reduction <add>, %7, %cst_6 [0] : vector<2x1x128xf32> to vector<1x128xf32>
    %9 = vector.broadcast %1 : f32 to vector<1x128xf32>
    %10 = arith.divf %6, %9 : vector<1x128xf32>
    %11 = vector.broadcast %1 : f32 to vector<1x128xf32>
    %12 = arith.divf %8, %11 : vector<1x128xf32>
    %13 = arith.mulf %10, %10 : vector<1x128xf32>
    %14 = arith.subf %12, %13 : vector<1x128xf32>
    %cst_7 = arith.constant 9.99999974E-6 : f32
    %15 = vector.broadcast %cst_7 : f32 to vector<1x128xf32>
    %16 = arith.addf %14, %15 : vector<1x128xf32>
    %17 = math.rsqrt %16 : vector<1x128xf32>
    %18 = arith.mulf %3, %17 : vector<1x128xf32>
    %19 = arith.mulf %10, %18 : vector<1x128xf32>
    %20 = arith.subf %4, %19 : vector<1x128xf32>
    %c0_8 = arith.constant 0 : index
    %c0_9 = arith.constant 0 : index
    %21 = vector.load %arg2[%c0_8, %c0_9] : memref<16x128xbf16, #tpu.memory_space<vmem>>, vector<16x128xbf16>
    %22 = arith.extf %21 : vector<16x128xbf16> to vector<16x128xf32>
    %23 = vector.broadcast %18 : vector<1x128xf32> to vector<16x128xf32>
    %24 = arith.mulf %22, %23 : vector<16x128xf32>
    %25 = vector.broadcast %20 : vector<1x128xf32> to vector<16x128xf32>
    %26 = arith.addf %24, %25 : vector<16x128xf32>
    %cst_10 = arith.constant 2.000000e-01 : f32
    %27 = vector.broadcast %cst_10 : f32 to vector<16x128xf32>
    %28 = arith.mulf %27, %26 : vector<16x128xf32>
    %29 = arith.maximumf %26, %28 : vector<16x128xf32>
    %30 = arith.truncf %29 : vector<16x128xf32> to vector<16x128xbf16>
    %c0_11 = arith.constant 0 : index
    %c0_12 = arith.constant 0 : index
    %31 = vector.load %arg3[%c0_11, %c0_12] : memref<16x128xbf16, #tpu.memory_space<vmem>>, vector<16x128xbf16>
    %32 = tpu.concatenate %30, %31 in 1 : vector<16x128xbf16>, vector<16x128xbf16> -> vector<16x256xbf16>
    %c0_13 = arith.constant 0 : index
    %c0_14 = arith.constant 0 : index
    %33 = vector.load %arg6[%c0_13, %c0_14] : memref<256x128xbf16, #tpu.memory_space<vmem>>, vector<256x128xbf16>
    %cst_15 = arith.constant dense<0.000000e+00> : vector<16x128xf32>
    %34 = tpu.matmul %32, %33, %cst_15 {dimension_numbers = #tpu.dot_dimension_numbers<[1], [0], [0], [1], [0, 0, 1, 1], [], []>} : vector<16x256xbf16>, vector<256x128xbf16>, vector<16x128xf32> -> vector<16x128xf32>
    %c2 = arith.constant 2 : index
    %c0_16 = arith.constant 0 : index
    %35 = vector.load %arg5[%c2, %c0_16] : memref<3x128xf32, #tpu.memory_space<vmem>>, vector<1x128xf32>
    %36 = vector.broadcast %35 : vector<1x128xf32> to vector<16x128xf32>
    %37 = arith.addf %34, %36 : vector<16x128xf32>
    %c0_17 = arith.constant 0 : index
    %c0_18 = arith.constant 0 : index
    %38 = vector.load %arg7[%c0_17, %c0_18] : memref<16x128xf32, #tpu.memory_space<vmem>>, vector<16x128xf32>
    tpu.vector_store %arg7[%c0_17, %c0_18], %37 {strides = array<i32>} : memref<16x128xf32, #tpu.memory_space<vmem>>, vector<16x128xf32>,
    return
  }
  func.func @transform_0(%arg0: i32) -> i32 {
    %c0_i32 = arith.constant 0 : i32
    %c0_i32_0 = arith.constant 0 : i32
    return %c0_i32 : i32
  }
  func.func @transform_1(%arg0: i32) -> (i32, i32) {
    %c0_i32 = arith.constant 0 : i32
    %c0_i32_0 = arith.constant 0 : i32
    return %arg0, %c0_i32 : i32, i32
  }
  func.func @transform_2(%arg0: i32) -> (i32, i32) {
    %c0_i32 = arith.constant 0 : i32
    %c0_i32_0 = arith.constant 0 : i32
    return %arg0, %c0_i32 : i32, i32
  }
  func.func @transform_3(%arg0: i32) -> (i32, i32, i32) {
    %c0_i32 = arith.constant 0 : i32
    %c0_i32_0 = arith.constant 0 : i32
    %c0_i32_1 = arith.constant 0 : i32
    %c0_i32_2 = arith.constant 0 : i32
    return %c0_i32, %c0_i32_0, %c0_i32_1 : i32, i32, i32
  }
  func.func @transform_4(%arg0: i32) -> (i32, i32) {
    %c0_i32 = arith.constant 0 : i32
    %c0_i32_0 = arith.constant 0 : i32
    %c0_i32_1 = arith.constant 0 : i32
    return %c0_i32, %c0_i32_0 : i32, i32
  }
  func.func @transform_5(%arg0: i32) -> (i32, i32) {
    %c0_i32 = arith.constant 0 : i32
    %c0_i32_0 = arith.constant 0 : i32
    %c0_i32_1 = arith.constant 0 : i32
    return %c0_i32, %c0_i32_0 : i32, i32
  }
  func.func @transform_6(%arg0: i32) -> (i32, i32) {
    %c0_i32 = arith.constant 0 : i32
    %c0_i32_0 = arith.constant 0 : i32
    return %arg0, %c0_i32 : i32, i32
  }
}

</mosaic_0001>

<llo_original>
// kernel: encoder_forward.3
$region0: #{encoder_forward.3}
  #allocation0 [shape = 'u32[]', space=smem, size = 0x4, offset = 0x4, fixed_abs, tag = 'smem constant byte address 0x4 - core index']
  #allocation1 [shape = 'u32[144,128]{1,0:T(1,128)}', space=vmem, size = 0x12000, scoped, tag = 'internal scratch']
  #allocation2 [shape = 's32[1]{0:T(128)S(6)}', space=smem, size = 0x200, scoped, tag = 'scoped memory for encoder_forward.3']
  %s0 = inlined_call_operand.<no memory space> [shape: s32[1], index: 0, kind: input, shape index: {}]
  %s1 = inlined_call_operand.vmem [shape: bf16[32,784], index: 1, kind: input, shape index: {}]
  %s2 = inlined_call_operand.vmem [shape: bf16[784,128], index: 2, kind: input, shape index: {}]
  %s3 = inlined_call_operand.vmem [shape: bf16[32,128], index: 3, kind: output, shape index: {0}]
  %s4 = inlined_call_operand.vmem [shape: f32[2,2,128], index: 4, kind: output, shape index: {1}]
  %5 = xla_tuple %s3, %s4
  %s6 = sld [smem:[#allocation0]]
  $region53: #{encoder_forward.3} parent=0
    _
  %s8 = ssub.s32 1, %s6
  %s9 = scalar_select 0, %s8, %s6
  %10 = sst [smem:[#allocation2]] %s0
  loop: start=0, step=1, limit=4
  $region2: #{encoder_forward.3} parent=0 // loop_pre_header
    _
  $region3: #{encoder_forward.3} parent=0 // loop_header
    %s12 = sphi 0, %s16
    %p13 = scmp.ge.s32.totalorder %s12, 4
    %s20 = sphi 0, %s20
    %s22 = sphi 0, %s20
    %s23 = sphi 0, %s22
    %s37 = sphi 0, %s23
    %s43 = sphi 0, %s45
    %s46 = sphi 0, %s43
    %s47 = sphi 0, %s46
    %s63 = sphi 0, %s47
    %s67 = sphi 0, %s67
    %s69 = sphi 0, %s67
    %s70 = sphi 0, %s69
    %s84 = sphi 0, %s70
    %s90 = sphi 0, %s92
    %s93 = sphi 0, %s90
    %s94 = sphi 0, %s93
    %s110 = sphi 0, %s94
    %s116 = sphi 0, %s118
    %s119 = sphi 0, %s116
    %s120 = sphi 0, %s119
    %s136 = sphi 0, %s120
  $region4: #{encoder_forward.3} parent=0 // loop_header_branch
    %15 = sbr.rel (%p13) target = $region8
  $region5: #{encoder_forward.3} parent=0 // loop_body
    %s17 = ssub.s32 %s12, 1
    %s18 = ssub.s32 %s12, 2
    %s19 = sadd.s32 %s12, 1
    %s21 = sadd.s32 %s20, 1
    %p24 = scmp.eq.s32.totalorder %s12, 1
    %p25 = scmp.ne.s32.totalorder %s20, %s22
    %p26 = scmp.eq.s32.totalorder %s12, 0
    %p27 = por %p25, %p26
    %p28 = scmp.ne.s32.totalorder %s20, %s22
    %p29 = scmp.eq.s32.totalorder %s17, 1
    %p30 = por %p28, %p29
    %p31 = scmp.ne.s32.totalorder %s22, %s23
    %p32 = scmp.eq.s32.totalorder %s17, 0
    %p33 = por %p31, %p32
    %p34 = scmp.ne.s32.totalorder %s22, %s23
    %p35 = scmp.eq.s32.totalorder %s18, 1
    %p36 = por %p34, %p35
    %p38 = scmp.ne.s32.totalorder %s23, %s37
    %p39 = scmp.eq.s32.totalorder %s18, 0
    %p40 = por %p38, %p39
    %s41 = ssub.s32 %s12, %s19
    %p42 = scmp.eq.s32.totalorder %s41, 0
    %s44 = sadd.s32 %s43, 1
    %s45 = scalar_select %p42, %s43, %s44
    %p48 = pneg %p42
    %p49 = scmp.eq.s32.totalorder %s12, 1
    %p50 = por %p48, %p49
    %p51 = scmp.ne.s32.totalorder %s43, %s46
    %p52 = scmp.eq.s32.totalorder %s12, 0
    %p53 = por %p51, %p52
    %p54 = scmp.ne.s32.totalorder %s43, %s46
    %p55 = scmp.eq.s32.totalorder %s17, 1
    %p56 = por %p54, %p55
    %p57 = scmp.ne.s32.totalorder %s46, %s47
    %p58 = scmp.eq.s32.totalorder %s17, 0
    %p59 = por %p57, %p58
    %p60 = scmp.ne.s32.totalorder %s46, %s47
    %p61 = scmp.eq.s32.totalorder %s18, 1
    %p62 = por %p60, %p61
    %p64 = scmp.ne.s32.totalorder %s47, %s63
    %p65 = scmp.eq.s32.totalorder %s18, 0
    %p66 = por %p64, %p65
    %s68 = sadd.s32 %s67, 1
    %p71 = scmp.eq.s32.totalorder %s12, 1
    %p72 = scmp.ne.s32.totalorder %s67, %s69
    %p73 = scmp.eq.s32.totalorder %s12, 0
    %p74 = por %p72, %p73
    %p75 = scmp.ne.s32.totalorder %s67, %s69
    %p76 = scmp.eq.s32.totalorder %s17, 1
    %p77 = por %p75, %p76
    %p78 = scmp.ne.s32.totalorder %s69, %s70
    %p79 = scmp.eq.s32.totalorder %s17, 0
    %p80 = por %p78, %p79
    %p81 = scmp.ne.s32.totalorder %s69, %s70
    %p82 = scmp.eq.s32.totalorder %s18, 1
    %p83 = por %p81, %p82
    %p85 = scmp.ne.s32.totalorder %s70, %s84
    %p86 = scmp.eq.s32.totalorder %s18, 0
    %p87 = por %p85, %p86
    %s88 = ssub.s32 %s12, %s19
    %p89 = scmp.eq.s32.totalorder %s88, 0
    %s91 = sadd.s32 %s90, 1
    %s92 = scalar_select %p89, %s90, %s91
    %p95 = pneg %p89
    %p96 = scmp.eq.s32.totalorder %s12, 1
    %p97 = por %p95, %p96
    %p98 = scmp.ne.s32.totalorder %s90, %s93
    %p99 = scmp.eq.s32.totalorder %s12, 0
    %p100 = por %p98, %p99
    %p101 = scmp.ne.s32.totalorder %s90, %s93
    %p102 = scmp.eq.s32.totalorder %s17, 1
    %p103 = por %p101, %p102
    %p104 = scmp.ne.s32.totalorder %s93, %s94
    %p105 = scmp.eq.s32.totalorder %s17, 0
    %p106 = por %p104, %p105
    %p107 = scmp.ne.s32.totalorder %s93, %s94
    %p108 = scmp.eq.s32.totalorder %s18, 1
    %p109 = por %p107, %p108
    %p111 = scmp.ne.s32.totalorder %s94, %s110
    %p112 = scmp.eq.s32.totalorder %s18, 0
    %p113 = por %p111, %p112
    %s114 = ssub.s32 %s12, %s19
    %p115 = scmp.eq.s32.totalorder %s114, 0
    %s117 = sadd.s32 %s116, 1
    %s118 = scalar_select %p115, %s116, %s117
    %p121 = pneg %p115
    %p122 = scmp.eq.s32.totalorder %s12, 1
    %p123 = por %p121, %p122
    %p124 = scmp.ne.s32.totalorder %s116, %s119
    %p125 = scmp.eq.s32.totalorder %s12, 0
    %p126 = por %p124, %p125
    %p127 = scmp.ne.s32.totalorder %s116, %s119
    %p128 = scmp.eq.s32.totalorder %s17, 1
    %p129 = por %p127, %p128
    %p130 = scmp.ne.s32.totalorder %s119, %s120
    %p131 = scmp.eq.s32.totalorder %s17, 0
    %p132 = por %p130, %p131
    %p133 = scmp.ne.s32.totalorder %s119, %s120
    %p134 = scmp.eq.s32.totalorder %s18, 1
    %p135 = por %p133, %p134
    %p137 = scmp.ne.s32.totalorder %s120, %s136
    %p138 = scmp.eq.s32.totalorder %s18, 0
    %p139 = por %p137, %p138
    %p140 = scmp.le.s32.totalorder 1, %s12
    %p141 = scmp.lt.s32.totalorder %s12, 3
    %p142 = pnand %p140, %p141
    %p143 = pneg %p142
    // Predicated region
    $region9: #{encoder_forward.3} parent=5 // pred_check
      _
    $region10: #{encoder_forward.3} parent=5 // pred_check_branch
      %145 = sbr.rel (%p142) target = $region12
    $region11: #{encoder_forward.3} parent=5 // pred_region
      %s146 = ssub.s32 %s12, 1
      // Predicated region
      $region13: #{encoder_forward.3} parent=11 // pred_check
        %p147 = pneg %p33
      $region14: #{encoder_forward.3} parent=11 // pred_check_branch
        %149 = sbr.rel (%p147) target = $region16
      $region15: #{encoder_forward.3} parent=11 // pred_region
        _
      $region16: #{encoder_forward.3} parent=11 // pred_fallthru
        _
      // Predicated region
      $region17: #{encoder_forward.3} parent=11 // pred_check
        %p150 = pneg %p80
      $region18: #{encoder_forward.3} parent=11 // pred_check_branch
        %152 = sbr.rel (%p150) target = $region20
      $region19: #{encoder_forward.3} parent=11 // pred_region
        _
      $region20: #{encoder_forward.3} parent=11 // pred_fallthru
        _
    $region12: #{encoder_forward.3} parent=5 // pred_fallthru
      _
    %p153 = scmp.lt.s32.totalorder %s12, 2
    // Predicated region
    $region21: #{encoder_forward.3} parent=5 // pred_check
      %p154 = pneg %p153
    $region22: #{encoder_forward.3} parent=5 // pred_check_branch
      %156 = sbr.rel (%p154) target = $region24
    $region23: #{encoder_forward.3} parent=5 // pred_region
      // Predicated region
      $region25: #{encoder_forward.3} parent=23 // pred_check
        %p157 = pneg %p53
      $region26: #{encoder_forward.3} parent=23 // pred_check_branch
        %159 = sbr.rel (%p157) target = $region28
      $region27: #{encoder_forward.3} parent=23 // pred_region
        %s160 = smul.u32 2, %s12
        %p161 = scmp.lt.s32.totalorder %s160, 3
        %s162 = scalar_select %p161, %s160, 3
        %s163 = smul.addr %s162, 7
        %s164 = smul.addr %s163, 4
        %s165 = scalar_lea.vmem %s1, %s164
        %s166 = smul.u32 2, %s12
      $region28: #{encoder_forward.3} parent=23 // pred_fallthru
        _
    $region24: #{encoder_forward.3} parent=5 // pred_fallthru
      _
    %p167 = scmp.le.s32.totalorder 1, %s12
    %p168 = scmp.lt.s32.totalorder %s12, 3
    %p169 = pnand %p167, %p168
    %p170 = pneg %p169
    // Predicated region
    $region29: #{encoder_forward.3} parent=5 // pred_check
      _
    $region30: #{encoder_forward.3} parent=5 // pred_check_branch
      %172 = sbr.rel (%p169) target = $region32
    $region31: #{encoder_forward.3} parent=5 // pred_region
      %s173 = ssub.s32 %s12, 1
      %p174 = pneg %p33
      %p175 = pneg %p30
      %s176 = smul.u32 2, %s17
      %p177 = scmp.lt.s32.totalorder %s176, 3
      %s178 = scalar_select %p177, %s176, 3
      %s179 = smul.addr %s178, 7
      %s180 = smul.addr %s179, 4
      %s181 = scalar_lea.vmem %s1, %s180
      %p182 = pneg %p59
      %p183 = pneg %p56
      %p184 = pneg %p80
      %p185 = pneg %p77
      %p186 = pneg %p106
      %p187 = pneg %p103
      %s188 = smul.u32 2, %s17
      %p189 = scmp.lt.s32.totalorder %s188, 3
      %s190 = scalar_select %p189, %s188, 3
      %s191 = smul.addr %s190, 4
      %s192 = scalar_lea.vmem %s3, %s191
      %p193 = pneg %p132
      %p194 = pneg %p129
      %p195 = scmp.lt.s32.totalorder %s17, 1
      %s196 = scalar_select %p195, %s17, 1
      %s197 = smul.addr %s196, 2
      %s198 = scalar_lea.vmem %s4, %s197
      %s199 = smul.u32 2, %s17
      %p200 = scmp.lt.s32.totalorder %s199, 3
      %s201 = scalar_select %p200, %s199, 3
      %s202 = smul.addr %s201, 7
      %s203 = smul.addr %s202, 4
      %s204 = scalar_lea.vmem %s1, %s203
      %s205 = smul.u32 2, %s17
      %s206 = smul.u32 2, %s17
      %p207 = scmp.lt.s32.totalorder %s206, 3
      %s208 = scalar_select %p207, %s206, 3
      %s209 = smul.addr %s208, 4
      %s210 = scalar_lea.vmem %s3, %s209
      %s211 = smul.u32 2, %s17
      %p212 = scmp.lt.s32.totalorder %s17, 1
      %s213 = scalar_select %p212, %s17, 1
      %s214 = smul.addr %s213, 2
      %s215 = scalar_lea.vmem %s4, %s214
      %v217 = vld [vmem:[%s204] sm:$0xff]
      %v218 = vld [vmem:[%s204 + $0x8] sm:$0xff]
      %v219 = vld [vmem:[%s204 + $0x10] sm:$0xff]
      %v220 = vld [vmem:[%s204 + $0x18] sm:$0xf]
      %v221 = vld [vmem:[%s204 + $0x1c] sm:$0xff]
      %v222 = vld [vmem:[%s204 + $0x24] sm:$0xff]
      %v223 = vld [vmem:[%s204 + $0x2c] sm:$0xff]
      %v224 = vld [vmem:[%s204 + $0x34] sm:$0xf]
      %v225 = vld [vmem:[%s2] sm:$0xf]
      %v226 = vld [vmem:[%s2 + $0x4] sm:$0xf]
      %v227 = vld [vmem:[%s2 + $0x8] sm:$0xf]
      %v228 = vld [vmem:[%s2 + $0xc] sm:$0xf]
      %v229 = vld [vmem:[%s2 + $0x10] sm:$0xf]
      %v230 = vld [vmem:[%s2 + $0x14] sm:$0xf]
      %v231 = vld [vmem:[%s2 + $0x18] sm:$0xf]
      %v232 = vld [vmem:[%s2 + $0x1c] sm:$0xf]
      %v233 = vld [vmem:[%s2 + $0x20] sm:$0xf]
      %v234 = vld [vmem:[%s2 + $0x24] sm:$0xf]
      %v235 = vld [vmem:[%s2 + $0x28] sm:$0xf]
      %v236 = vld [vmem:[%s2 + $0x2c] sm:$0xf]
      %v237 = vld [vmem:[%s2 + $0x30] sm:$0xf]
      %v238 = vld [vmem:[%s2 + $0x34] sm:$0xf]
      %v239 = vld [vmem:[%s2 + $0x38] sm:$0xf]
      %v240 = vld [vmem:[%s2 + $0x3c] sm:$0xf]
      %v241 = vld [vmem:[%s2 + $0x40] sm:$0xf]
      %v242 = vld [vmem:[%s2 + $0x44] sm:$0xf]
      %v243 = vld [vmem:[%s2 + $0x48] sm:$0xf]
      %v244 = vld [vmem:[%s2 + $0x4c] sm:$0xf]
      %v245 = vld [vmem:[%s2 + $0x50] sm:$0xf]
      %v246 = vld [vmem:[%s2 + $0x54] sm:$0xf]
      %v247 = vld [vmem:[%s2 + $0x58] sm:$0xf]
      %v248 = vld [vmem:[%s2 + $0x5c] sm:$0xf]
      %v249 = vld [vmem:[%s2 + $0x60] sm:$0xf]
      %v250 = vld [vmem:[%s2 + $0x64] sm:$0xf]
      %v251 = vld [vmem:[%s2 + $0x68] sm:$0xf]
      %v252 = vld [vmem:[%s2 + $0x6c] sm:$0xf]
      %v253 = vld [vmem:[%s2 + $0x70] sm:$0xf]
      %v254 = vld [vmem:[%s2 + $0x74] sm:$0xf]
      %v255 = vld [vmem:[%s2 + $0x78] sm:$0xf]
      %v256 = vld [vmem:[%s2 + $0x7c] sm:$0xf]
      %v257 = vld [vmem:[%s2 + $0x80] sm:$0xf]
      %v258 = vld [vmem:[%s2 + $0x84] sm:$0xf]
      %v259 = vld [vmem:[%s2 + $0x88] sm:$0xf]
      %v260 = vld [vmem:[%s2 + $0x8c] sm:$0xf]
      %v261 = vld [vmem:[%s2 + $0x90] sm:$0xf]
      %v262 = vld [vmem:[%s2 + $0x94] sm:$0xf]
      %v263 = vld [vmem:[%s2 + $0x98] sm:$0xf]
      %v264 = vld [vmem:[%s2 + $0x9c] sm:$0xf]
      %v265 = vld [vmem:[%s2 + $0xa0] sm:$0xf]
      %v266 = vld [vmem:[%s2 + $0xa4] sm:$0xf]
      %v267 = vld [vmem:[%s2 + $0xa8] sm:$0xf]
      %v268 = vld [vmem:[%s2 + $0xac] sm:$0xf]
      %v269 = vld [vmem:[%s2 + $0xb0] sm:$0xf]
      %v270 = vld [vmem:[%s2 + $0xb4] sm:$0xf]
      %v271 = vld [vmem:[%s2 + $0xb8] sm:$0xf]
      %v272 = vld [vmem:[%s2 + $0xbc] sm:$0xf]
      %v273 = vld [vmem:[%s2 + $0xc0] sm:$0xf]
      %v274 = vld [vmem:[%s2 + $0xc4] sm:$0xf]
      %v275 = vld [vmem:[%s2 + $0xc8] sm:$0xf]
      %v276 = vld [vmem:[%s2 + $0xcc] sm:$0xf]
      %v277 = vld [vmem:[%s2 + $0xd0] sm:$0xf]
      %v278 = vld [vmem:[%s2 + $0xd4] sm:$0xf]
      %v279 = vld [vmem:[%s2 + $0xd8] sm:$0xf]
      %v280 = vld [vmem:[%s2 + $0xdc] sm:$0xf]
      %v281 = vld [vmem:[%s2 + $0xe0] sm:$0xf]
      %v282 = vld [vmem:[%s2 + $0xe4] sm:$0xf]
      %v283 = vld [vmem:[%s2 + $0xe8] sm:$0xf]
      %v284 = vld [vmem:[%s2 + $0xec] sm:$0xf]
      %v285 = vld [vmem:[%s2 + $0xf0] sm:$0xf]
      %v286 = vld [vmem:[%s2 + $0xf4] sm:$0xf]
      %v287 = vld [vmem:[%s2 + $0xf8] sm:$0xf]
      %v288 = vld [vmem:[%s2 + $0xfc] sm:$0xf]
      %v289 = vld [vmem:[%s2 + $0x100] sm:$0xf]
      %v290 = vld [vmem:[%s2 + $0x104] sm:$0xf]
      %v291 = vld [vmem:[%s2 + $0x108] sm:$0xf]
      %v292 = vld [vmem:[%s2 + $0x10c] sm:$0xf]
      %v293 = vld [vmem:[%s2 + $0x110] sm:$0xf]
      %v294 = vld [vmem:[%s2 + $0x114] sm:$0xf]
      %v295 = vld [vmem:[%s2 + $0x118] sm:$0xf]
      %v296 = vld [vmem:[%s2 + $0x11c] sm:$0xf]
      %v297 = vld [vmem:[%s2 + $0x120] sm:$0xf]
      %v298 = vld [vmem:[%s2 + $0x124] sm:$0xf]
      %v299 = vld [vmem:[%s2 + $0x128] sm:$0xf]
      %v300 = vld [vmem:[%s2 + $0x12c] sm:$0xf]
      %v301 = vld [vmem:[%s2 + $0x130] sm:$0xf]
      %v302 = vld [vmem:[%s2 + $0x134] sm:$0xf]
      %v303 = vld [vmem:[%s2 + $0x138] sm:$0xf]
      %v304 = vld [vmem:[%s2 + $0x13c] sm:$0xf]
      %v305 = vld [vmem:[%s2 + $0x140] sm:$0xf]
      %v306 = vld [vmem:[%s2 + $0x144] sm:$0xf]
      %v307 = vld [vmem:[%s2 + $0x148] sm:$0xf]
      %v308 = vld [vmem:[%s2 + $0x14c] sm:$0xf]
      %v309 = vld [vmem:[%s2 + $0x150] sm:$0xf]
      %v310 = vld [vmem:[%s2 + $0x154] sm:$0xf]
      %v311 = vld [vmem:[%s2 + $0x158] sm:$0xf]
      %v312 = vld [vmem:[%s2 + $0x15c] sm:$0xf]
      %v313 = vld [vmem:[%s2 + $0x160] sm:$0xf]
      %v314 = vld [vmem:[%s2 + $0x164] sm:$0xf]
      %v315 = vld [vmem:[%s2 + $0x168] sm:$0xf]
      %v316 = vld [vmem:[%s2 + $0x16c] sm:$0xf]
      %v317 = vld [vmem:[%s2 + $0x170] sm:$0xf]
      %v318 = vld [vmem:[%s2 + $0x174] sm:$0xf]
      %v319 = vld [vmem:[%s2 + $0x178] sm:$0xf]
      %v320 = vld [vmem:[%s2 + $0x17c] sm:$0xf]
      %v321 = vld [vmem:[%s2 + $0x180] sm:$0xf]
      %v322 = vld [vmem:[%s2 + $0x184] sm:$0xf]
      %v331 = vunpack.c.l.b16 %v217
      %v332 = vunpack.c.h.b16 %v217
      %v333 = vunpack.c.l.b16 %v218
      %v334 = vunpack.c.h.b16 %v218
      %v335 = vunpack.c.l.b16 %v219
      %v336 = vunpack.c.h.b16 %v219
      %v337 = vunpack.c.l.b16 %v220
      %v338 = vunpack.c.l.b16 %v221
      %v339 = vunpack.c.h.b16 %v221
      %v340 = vunpack.c.l.b16 %v222
      %v341 = vunpack.c.h.b16 %v222
      %v342 = vunpack.c.l.b16 %v223
      %v343 = vunpack.c.h.b16 %v223
      %v344 = vunpack.c.l.b16 %v224
      %v345 = vpack.c.b16 %v338, %v331
      %v346 = vpack.c.b16 %v339, %v332
      %v347 = vpack.c.b16 %v340, %v333
      %v348 = vpack.c.b16 %v341, %v334
      %v349 = vpack.c.b16 %v342, %v335
      %v350 = vpack.c.b16 %v343, %v336
      %v351 = vpack.c.b16 %v344, %v337
      %v456 = vunpack.c.l.b16 %v225
      %v457 = vunpack.c.l.b16 %v226
      %v458 = vunpack.c.l.b16 %v227
      %v459 = vunpack.c.l.b16 %v228
      %v460 = vunpack.c.l.b16 %v229
      %v461 = vunpack.c.l.b16 %v230
      %v462 = vunpack.c.l.b16 %v231
      %v463 = vunpack.c.l.b16 %v232
      %v464 = vunpack.c.l.b16 %v233
      %v465 = vunpack.c.l.b16 %v234
      %v466 = vunpack.c.l.b16 %v235
      %v467 = vunpack.c.l.b16 %v236
      %v468 = vunpack.c.l.b16 %v237
      %v469 = vunpack.c.l.b16 %v238
      %v470 = vunpack.c.l.b16 %v239
      %v471 = vunpack.c.l.b16 %v240
      %v472 = vunpack.c.l.b16 %v241
      %v473 = vunpack.c.l.b16 %v242
      %v474 = vunpack.c.l.b16 %v243
      %v475 = vunpack.c.l.b16 %v244
      %v476 = vunpack.c.l.b16 %v245
      %v477 = vunpack.c.l.b16 %v246
      %v478 = vunpack.c.l.b16 %v247
      %v479 = vunpack.c.l.b16 %v248
      %v480 = vunpack.c.l.b16 %v249
      %v481 = vunpack.c.l.b16 %v250
      %v482 = vunpack.c.l.b16 %v251
      %v483 = vunpack.c.l.b16 %v252
      %v484 = vunpack.c.l.b16 %v253
      %v485 = vunpack.c.l.b16 %v254
      %v486 = vunpack.c.l.b16 %v255
      %v487 = vunpack.c.l.b16 %v256
      %v488 = vunpack.c.l.b16 %v257
      %v489 = vunpack.c.l.b16 %v258
      %v490 = vunpack.c.l.b16 %v259
      %v491 = vunpack.c.l.b16 %v260
      %v492 = vunpack.c.l.b16 %v261
      %v493 = vunpack.c.l.b16 %v262
      %v494 = vunpack.c.l.b16 %v263
      %v495 = vunpack.c.l.b16 %v264
      %v496 = vunpack.c.l.b16 %v265
      %v497 = vunpack.c.l.b16 %v266
      %v498 = vunpack.c.l.b16 %v267
      %v499 = vunpack.c.l.b16 %v268
      %v500 = vunpack.c.l.b16 %v269
      %v501 = vunpack.c.l.b16 %v270
      %v502 = vunpack.c.l.b16 %v271
      %v503 = vunpack.c.l.b16 %v272
      %v504 = vunpack.c.l.b16 %v273
      %v505 = vunpack.c.l.b16 %v274
      %v506 = vunpack.c.l.b16 %v275
      %v507 = vunpack.c.l.b16 %v276
      %v508 = vunpack.c.l.b16 %v277
      %v509 = vunpack.c.l.b16 %v278
      %v510 = vunpack.c.l.b16 %v279
      %v511 = vunpack.c.l.b16 %v280
      %v512 = vunpack.c.l.b16 %v281
      %v513 = vunpack.c.l.b16 %v282
      %v514 = vunpack.c.l.b16 %v283
      %v515 = vunpack.c.l.b16 %v284
      %v516 = vunpack.c.l.b16 %v285
      %v517 = vunpack.c.l.b16 %v286
      %v518 = vunpack.c.l.b16 %v287
      %v519 = vunpack.c.l.b16 %v288
      %v520 = vunpack.c.l.b16 %v289
      %v521 = vunpack.c.l.b16 %v290
      %v522 = vunpack.c.l.b16 %v291
      %v523 = vunpack.c.l.b16 %v292
      %v524 = vunpack.c.l.b16 %v293
      %v525 = vunpack.c.l.b16 %v294
      %v526 = vunpack.c.l.b16 %v295
      %v527 = vunpack.c.l.b16 %v296
      %v528 = vunpack.c.l.b16 %v297
      %v529 = vunpack.c.l.b16 %v298
      %v530 = vunpack.c.l.b16 %v299
      %v531 = vunpack.c.l.b16 %v300
      %v532 = vunpack.c.l.b16 %v301
      %v533 = vunpack.c.l.b16 %v302
      %v534 = vunpack.c.l.b16 %v303
      %v535 = vunpack.c.l.b16 %v304
      %v536 = vunpack.c.l.b16 %v305
      %v537 = vunpack.c.l.b16 %v306
      %v538 = vunpack.c.l.b16 %v307
      %v539 = vunpack.c.l.b16 %v308
      %v540 = vunpack.c.l.b16 %v309
      %v541 = vunpack.c.l.b16 %v310
      %v542 = vunpack.c.l.b16 %v311
      %v543 = vunpack.c.l.b16 %v312
      %v544 = vunpack.c.l.b16 %v313
      %v545 = vunpack.c.l.b16 %v314
      %v546 = vunpack.c.l.b16 %v315
      %v547 = vunpack.c.l.b16 %v316
      %v548 = vunpack.c.l.b16 %v317
      %v549 = vunpack.c.l.b16 %v318
      %v550 = vunpack.c.l.b16 %v319
      %v551 = vunpack.c.l.b16 %v320
      %v552 = vunpack.c.l.b16 %v321
      %v553 = vunpack.c.l.b16 %v322
      %v554 = vpack.c.b16 %v457, %v456
      %v555 = vpack.c.b16 %v459, %v458
      %v556 = vpack.c.b16 %v461, %v460
      %v557 = vpack.c.b16 %v463, %v462
      %v558 = vpack.c.b16 %v465, %v464
      %v559 = vpack.c.b16 %v467, %v466
      %v560 = vpack.c.b16 %v469, %v468
      %v561 = vpack.c.b16 %v471, %v470
      %v562 = vpack.c.b16 %v473, %v472
      %v563 = vpack.c.b16 %v475, %v474
      %v564 = vpack.c.b16 %v477, %v476
      %v565 = vpack.c.b16 %v479, %v478
      %v566 = vpack.c.b16 %v481, %v480
      %v567 = vpack.c.b16 %v483, %v482
      %v568 = vpack.c.b16 %v485, %v484
      %v569 = vpack.c.b16 %v487, %v486
      %v570 = vpack.c.b16 %v489, %v488
      %v571 = vpack.c.b16 %v491, %v490
      %v572 = vpack.c.b16 %v493, %v492
      %v573 = vpack.c.b16 %v495, %v494
      %v574 = vpack.c.b16 %v497, %v496
      %v575 = vpack.c.b16 %v499, %v498
      %v576 = vpack.c.b16 %v501, %v500
      %v577 = vpack.c.b16 %v503, %v502
      %v578 = vpack.c.b16 %v505, %v504
      %v579 = vpack.c.b16 %v507, %v506
      %v580 = vpack.c.b16 %v509, %v508
      %v581 = vpack.c.b16 %v511, %v510
      %v582 = vpack.c.b16 %v513, %v512
      %v583 = vpack.c.b16 %v515, %v514
      %v584 = vpack.c.b16 %v517, %v516
      %v585 = vpack.c.b16 %v519, %v518
      %v586 = vpack.c.b16 %v521, %v520
      %v587 = vpack.c.b16 %v523, %v522
      %v588 = vpack.c.b16 %v525, %v524
      %v589 = vpack.c.b16 %v527, %v526
      %v590 = vpack.c.b16 %v529, %v528
      %v591 = vpack.c.b16 %v531, %v530
      %v592 = vpack.c.b16 %v533, %v532
      %v593 = vpack.c.b16 %v535, %v534
      %v594 = vpack.c.b16 %v537, %v536
      %v595 = vpack.c.b16 %v539, %v538
      %v596 = vpack.c.b16 %v541, %v540
      %v597 = vpack.c.b16 %v543, %v542
      %v598 = vpack.c.b16 %v545, %v544
      %v599 = vpack.c.b16 %v547, %v546
      %v600 = vpack.c.b16 %v549, %v548
      %v601 = vpack.c.b16 %v551, %v550
      %v602 = vpack.c.b16 %v553, %v552
      %vm652 = vcmask 130048
      %v654 = vsel %vm652, %v351, 0
      %656 = vmatprep.subr.bf16.mxu0 0
      %657 = vmatpush1.bf16.msra.mxu0 %v554
      %658 = vmatprep.subr.bf16.mxu0 0
      %659 = vmatpush1.bf16.msra.mxu0 %v555
      %660 = vmatprep.subr.bf16.mxu0 0
      %661 = vmatpush1.bf16.msra.mxu0 %v556
      %662 = vmatprep.subr.bf16.mxu0 0
      %663 = vmatpush1.bf16.msra.mxu0 %v557
      %664 = vmatprep.subr.bf16.mxu0 0
      %665 = vmatpush1.bf16.msra.mxu0 %v558
      %666 = vmatprep.subr.bf16.mxu0 0
      %667 = vmatpush1.bf16.msra.mxu0 %v559
      %668 = vmatprep.subr.bf16.mxu0 0
      %669 = vmatpush1.bf16.msra.mxu0 %v560
      %670 = vmatprep.subr.bf16.mxu0 0
      %671 = vmatpush1.bf16.msra.mxu0 %v561
      %672 = vmatprep.subr.bf16.mxu0 0
      %673 = vmatpush1.bf16.msra.mxu0 %v562
      %674 = vmatprep.subr.bf16.mxu0 0
      %675 = vmatpush1.bf16.msra.mxu0 %v563
      %676 = vmatprep.subr.bf16.mxu0 0
      %677 = vmatpush1.bf16.msra.mxu0 %v564
      %678 = vmatprep.subr.bf16.mxu0 0
      %679 = vmatpush1.bf16.msra.mxu0 %v565
      %680 = vmatprep.subr.bf16.mxu0 0
      %681 = vmatpush1.bf16.msra.mxu0 %v566
      %682 = vmatprep.subr.bf16.mxu0 0
      %683 = vmatpush1.bf16.msra.mxu0 %v567
      %684 = vmatprep.subr.bf16.mxu0 0
      %685 = vmatpush1.bf16.msra.mxu0 %v568
      %686 = vmatprep.subr.bf16.mxu0 0
      %687 = vmatpush1.bf16.msra.mxu0 %v569
      %688 = vmatprep.mubr.bf16.mxu0 %v346
      %689 = vmatmul.mubr.bf16.gmra.mrb[0].mxu0 %v345
      %v690 = vpop.f32.mrb[0].mxu0
      %v691 = vadd.f32 0.0, %v690
      %v692 = vpop.f32.mrb[0].mxu0
      %v693 = vpop.f32.mrb[0].mxu0
      %v694 = vadd.f32 0.0, %v693
      %v695 = vpop.f32.mrb[0].mxu0
      %696 = vdwg.mxu0
      %697 = vmatprep.subr.bf16.mxu0 0
      %698 = vmatpush1.bf16.msra.mxu0 %v570
      %699 = vmatprep.subr.bf16.mxu0 0
      %700 = vmatpush1.bf16.msra.mxu0 %v571
      %701 = vmatprep.subr.bf16.mxu0 0
      %702 = vmatpush1.bf16.msra.mxu0 %v572
      %703 = vmatprep.subr.bf16.mxu0 0
      %704 = vmatpush1.bf16.msra.mxu0 %v573
      %705 = vmatprep.subr.bf16.mxu0 0
      %706 = vmatpush1.bf16.msra.mxu0 %v574
      %707 = vmatprep.subr.bf16.mxu0 0
      %708 = vmatpush1.bf16.msra.mxu0 %v575
      %709 = vmatprep.subr.bf16.mxu0 0
      %710 = vmatpush1.bf16.msra.mxu0 %v576
      %711 = vmatprep.subr.bf16.mxu0 0
      %712 = vmatpush1.bf16.msra.mxu0 %v577
      %713 = vmatprep.subr.bf16.mxu0 0
      %714 = vmatpush1.bf16.msra.mxu0 %v578
      %715 = vmatprep.subr.bf16.mxu0 0
      %716 = vmatpush1.bf16.msra.mxu0 %v579
      %717 = vmatprep.subr.bf16.mxu0 0
      %718 = vmatpush1.bf16.msra.mxu0 %v580
      %719 = vmatprep.subr.bf16.mxu0 0
      %720 = vmatpush1.bf16.msra.mxu0 %v581
      %721 = vmatprep.subr.bf16.mxu0 0
      %722 = vmatpush1.bf16.msra.mxu0 %v582
      %723 = vmatprep.subr.bf16.mxu0 0
      %724 = vmatpush1.bf16.msra.mxu0 %v583
      %725 = vmatprep.subr.bf16.mxu0 0
      %726 = vmatpush1.bf16.msra.mxu0 %v584
      %727 = vmatprep.subr.bf16.mxu0 0
      %728 = vmatpush1.bf16.msra.mxu0 %v585
      %729 = vmatprep.mubr.bf16.mxu0 %v348
      %730 = vmatmul.mubr.bf16.gmra.mrb[0].mxu0 %v347
      %v731 = vpop.f32.mrb[0].mxu0
      %v732 = vadd.f32 %v691, %v731
      %v733 = vpop.f32.mrb[0].mxu0
      %v734 = vpop.f32.mrb[0].mxu0
      %v735 = vadd.f32 %v694, %v734
      %v736 = vpop.f32.mrb[0].mxu0
      %737 = vdwg.mxu0
      %738 = vmatprep.subr.bf16.mxu0 0
      %739 = vmatpush1.bf16.msra.mxu0 %v586
      %740 = vmatprep.subr.bf16.mxu0 0
      %741 = vmatpush1.bf16.msra.mxu0 %v587
      %742 = vmatprep.subr.bf16.mxu0 0
      %743 = vmatpush1.bf16.msra.mxu0 %v588
      %744 = vmatprep.subr.bf16.mxu0 0
      %745 = vmatpush1.bf16.msra.mxu0 %v589
      %746 = vmatprep.subr.bf16.mxu0 0
      %747 = vmatpush1.bf16.msra.mxu0 %v590
      %748 = vmatprep.subr.bf16.mxu0 0
      %749 = vmatpush1.bf16.msra.mxu0 %v591
      %750 = vmatprep.subr.bf16.mxu0 0
      %751 = vmatpush1.bf16.msra.mxu0 %v592
      %752 = vmatprep.subr.bf16.mxu0 0
      %753 = vmatpush1.bf16.msra.mxu0 %v593
      %754 = vmatprep.subr.bf16.mxu0 0
      %755 = vmatpush1.bf16.msra.mxu0 %v594
      %756 = vmatprep.subr.bf16.mxu0 0
      %757 = vmatpush1.bf16.msra.mxu0 %v595
      %758 = vmatprep.subr.bf16.mxu0 0
      %759 = vmatpush1.bf16.msra.mxu0 %v596
      %760 = vmatprep.subr.bf16.mxu0 0
      %761 = vmatpush1.bf16.msra.mxu0 %v597
      %762 = vmatprep.subr.bf16.mxu0 0
      %763 = vmatpush1.bf16.msra.mxu0 %v598
      %764 = vmatprep.subr.bf16.mxu0 0
      %765 = vmatpush1.bf16.msra.mxu0 %v599
      %766 = vmatprep.subr.bf16.mxu0 0
      %767 = vmatpush1.bf16.msra.mxu0 %v600
      %768 = vmatprep.subr.bf16.mxu0 0
      %769 = vmatpush1.bf16.msra.mxu0 %v601
      %770 = vmatprep.mubr.bf16.mxu0 %v350
      %771 = vmatmul.mubr.bf16.gmra.mrb[0].mxu0 %v349
      %v772 = vpop.f32.mrb[0].mxu0
      %v773 = vadd.f32 %v732, %v772
      %v774 = vpop.f32.mrb[0].mxu0
      %v775 = vpop.f32.mrb[0].mxu0
      %v776 = vadd.f32 %v735, %v775
      %v777 = vpop.f32.mrb[0].mxu0
      %778 = vdwg.mxu0
      %779 = vmatprep.subr.bf16.mxu0 0
      %780 = vmatpush1.bf16.msra.mxu0 %v602
      %781 = vmatprep.subr.bf16.mxu0 0
      %782 = vmatpush1.bf16.msra.mxu0 0
      %783 = vmatprep.subr.bf16.mxu0 0
      %784 = vmatpush1.bf16.msra.mxu0 0
      %785 = vmatprep.subr.bf16.mxu0 0
      %786 = vmatpush1.bf16.msra.mxu0 0
      %787 = vmatprep.subr.bf16.mxu0 0
      %788 = vmatpush1.bf16.msra.mxu0 0
      %789 = vmatprep.subr.bf16.mxu0 0
      %790 = vmatpush1.bf16.msra.mxu0 0
      %791 = vmatprep.subr.bf16.mxu0 0
      %792 = vmatpush1.bf16.msra.mxu0 0
      %793 = vmatprep.subr.bf16.mxu0 0
      %794 = vmatpush1.bf16.msra.mxu0 0
      %795 = vmatprep.subr.bf16.mxu0 0
      %796 = vmatpush1.bf16.msra.mxu0 0
      %797 = vmatprep.subr.bf16.mxu0 0
      %798 = vmatpush1.bf16.msra.mxu0 0
      %799 = vmatprep.subr.bf16.mxu0 0
      %800 = vmatpush1.bf16.msra.mxu0 0
      %801 = vmatprep.subr.bf16.mxu0 0
      %802 = vmatpush1.bf16.msra.mxu0 0
      %803 = vmatprep.subr.bf16.mxu0 0
      %804 = vmatpush1.bf16.msra.mxu0 0
      %805 = vmatprep.subr.bf16.mxu0 0
      %806 = vmatpush1.bf16.msra.mxu0 0
      %807 = vmatprep.subr.bf16.mxu0 0
      %808 = vmatpush1.bf16.msra.mxu0 0
      %809 = vmatprep.subr.bf16.mxu0 0
      %810 = vmatpush1.bf16.msra.mxu0 0
      %811 = vmatprep.mubr.bf16.mxu0 0
      %812 = vmatmul.mubr.bf16.gmra.mrb[0].mxu0 %v654
      %v813 = vpop.f32.mrb[0].mxu0
      %v814 = vadd.f32 %v773, %v813
      %v815 = vpop.f32.mrb[0].mxu0
      %v816 = vpop.f32.mrb[0].mxu0
      %v817 = vadd.f32 %v776, %v816
      %v818 = vpop.f32.mrb[0].mxu0
      %819 = vdwg.mxu0
      %v820 = vpack.c.bf16 %v817, %v814
      %v822 = vunpack.c.l.b16 %v820
      %v823 = vunpack.c.h.b16 %v820
      %v824 = vpack.c.b16 %v822, %v822
      %v825 = vpack.c.b16 %v823, %v823
      %828 = vst [vmem:[%s210] sm:$0xf] %v824
      %829 = vst [vmem:[%s210 + $0x4] sm:$0xf] %v825
      %s830 = sld [smem:[#allocation2]]
      %s831 = smul.u32 %s17, 16
      %v832 = vlaneseq
      %v833 = vshrl.u32 %v832, 7
      %v834 = vadd.s32 %v833, 8
      %v835 = vstv %s831
      %v836 = vadd.s32 %v835, %v833
      %v837 = vadd.s32 %v835, %v834
      %v838 = vstv %s830
      %vm839 = vcmp.lt.s32.totalorder %v836, %v838
      %vm840 = vcmp.lt.s32.totalorder %v837, %v838
      %v841 = vsel %vm839, 1, 0
      %v842 = vsel %vm840, 1, 0
      %vm843 = vcmp.eq.s32.totalorder %v841, 1
      %vm844 = vcmp.eq.s32.totalorder %v842, 1
      %v845 = vsel %vm843, %v814, 0.0
      %v846 = vsel %vm844, %v817, 0.0
      %v847 = vadd.f32 %v845, %v846
      %v848 = vrot.slane %v847, 4
      %v849 = vadd.f32 %v847, %v848
      %v850 = vrot.slane %v849, 2
      %v851 = vadd.f32 %v849, %v850
      %v852 = vrot.slane %v851, 1
      %v853 = vadd.f32 %v851, %v852
      %v854 = vmul.f32 %v845, %v845
      %v855 = vmul.f32 %v846, %v846
      %v856 = vadd.f32 %v854, %v855
      %v857 = vrot.slane %v856, 4
      %v858 = vadd.f32 %v856, %v857
      %v859 = vrot.slane %v858, 2
      %v860 = vadd.f32 %v858, %v859
      %v861 = vrot.slane %v860, 1
      %v862 = vadd.f32 %v860, %v861
      %vm863 = vcmask 1040384
      %v864 = vsel %vm863, %v853, %v862
      %865 = vst [vmem:[%s215] sm:$0x3] %v864
      %s866 = smul.u32 2, %s17
      %p867 = scmp.lt.s32.totalorder %s866, 3
      %s868 = scalar_select %p867, %s866, 3
      %s869 = smul.addr %s868, 4
      %s870 = scalar_lea.vmem %s3, %s869
      %p871 = scmp.lt.s32.totalorder %s17, 1
      %s872 = scalar_select %p871, %s17, 1
      %s873 = smul.addr %s872, 2
      %s874 = scalar_lea.vmem %s4, %s873
      // Predicated region
      $region33: #{encoder_forward.3} parent=31 // pred_check
        %p875 = pneg %p103
      $region34: #{encoder_forward.3} parent=31 // pred_check_branch
        %877 = sbr.rel (%p875) target = $region36
      $region35: #{encoder_forward.3} parent=31 // pred_region
        %s878 = smul.u32 2, %s17
      $region36: #{encoder_forward.3} parent=31 // pred_fallthru
        _
      // Predicated region
      $region37: #{encoder_forward.3} parent=31 // pred_check
        %p879 = pneg %p129
      $region38: #{encoder_forward.3} parent=31 // pred_check_branch
        %881 = sbr.rel (%p879) target = $region40
      $region39: #{encoder_forward.3} parent=31 // pred_region
        _
      $region40: #{encoder_forward.3} parent=31 // pred_fallthru
        _
    $region32: #{encoder_forward.3} parent=5 // pred_fallthru
      _
    %p882 = scmp.le.s32.totalorder 2, %s12
    // Predicated region
    $region41: #{encoder_forward.3} parent=5 // pred_check
      %p883 = pneg %p882
    $region42: #{encoder_forward.3} parent=5 // pred_check_branch
      %885 = sbr.rel (%p883) target = $region44
    $region43: #{encoder_forward.3} parent=5 // pred_region
      %s886 = ssub.s32 %s12, 2
      // Predicated region
      $region45: #{encoder_forward.3} parent=43 // pred_check
        %p887 = pneg %p109
      $region46: #{encoder_forward.3} parent=43 // pred_check_branch
        %889 = sbr.rel (%p887) target = $region48
      $region47: #{encoder_forward.3} parent=43 // pred_region
        %s890 = smul.u32 2, %s18
        %p891 = scmp.lt.s32.totalorder %s890, 3
        %s892 = scalar_select %p891, %s890, 3
        %s893 = smul.addr %s892, 4
        %s894 = scalar_lea.vmem %s3, %s893
      $region48: #{encoder_forward.3} parent=43 // pred_fallthru
        _
      // Predicated region
      $region49: #{encoder_forward.3} parent=43 // pred_check
        %p895 = pneg %p135
      $region50: #{encoder_forward.3} parent=43 // pred_check_branch
        %897 = sbr.rel (%p895) target = $region52
      $region51: #{encoder_forward.3} parent=43 // pred_region
        %p898 = scmp.lt.s32.totalorder %s18, 1
        %s899 = scalar_select %p898, %s18, 1
        %s900 = smul.addr %s899, 2
        %s901 = scalar_lea.vmem %s4, %s900
      $region52: #{encoder_forward.3} parent=43 // pred_fallthru
        _
    $region44: #{encoder_forward.3} parent=5 // pred_fallthru
      _
  $region6: #{encoder_forward.3} parent=0 // loop_footer
    %s16 = sadd.s32 1, %s12
  $region7: #{encoder_forward.3} parent=0 // loop_footer_branch
    %11 = sbr.rel target = $region3
  $region8: #{encoder_forward.3} parent=0 // loop_exit
    _

// kernel: encoder_forward.4
$region0: #{encoder_forward.4}
  #allocation0 [shape = 'u32[]', space=smem, size = 0x4, offset = 0x4, fixed_abs, tag = 'smem constant byte address 0x4 - core index']
  #allocation1 [shape = 'u32[144,128]{1,0:T(1,128)}', space=vmem, size = 0x12000, scoped, tag = 'internal scratch']
  #allocation2 [shape = 's32[1]{0:T(128)S(6)}', space=smem, size = 0x200, scoped, tag = 'scoped memory for encoder_forward.4']
  %s0 = inlined_call_operand.<no memory space> [shape: s32[1], index: 0, kind: input, shape index: {}]
  %s1 = inlined_call_operand.vmem [shape: bf16[32,128], index: 1, kind: input, shape index: {}]
  %s2 = inlined_call_operand.vmem [shape: bf16[32,128], index: 2, kind: input, shape index: {}]
  %s3 = inlined_call_operand.vmem [shape: f32[2,2,128], index: 3, kind: input, shape index: {}]
  %s4 = inlined_call_operand.vmem [shape: f32[3,128], index: 4, kind: input, shape index: {}]
  %s5 = inlined_call_operand.vmem [shape: bf16[256,128], index: 5, kind: input, shape index: {}]
  %s6 = inlined_call_operand.vmem [shape: bf16[32,128], index: 6, kind: output, shape index: {0}]
  %s7 = inlined_call_operand.vmem [shape: f32[2,2,128], index: 7, kind: output, shape index: {1}]
  %8 = xla_tuple %s6, %s7
  %s9 = sld [smem:[#allocation0]]
  $region65: #{encoder_forward.4} parent=0
    _
  %s11 = ssub.s32 1, %s9
  %s12 = scalar_select 0, %s11, %s9
  %13 = sst [smem:[#allocation2]] %s0
  loop: start=0, step=1, limit=4
  $region2: #{encoder_forward.4} parent=0 // loop_pre_header
    _
  $region3: #{encoder_forward.4} parent=0 // loop_header
    %s15 = sphi 0, %s19
    %p16 = scmp.ge.s32.totalorder %s15, 4
    %s23 = sphi 0, %s23
    %s25 = sphi 0, %s23
    %s26 = sphi 0, %s25
    %s40 = sphi 0, %s26
    %s46 = sphi 0, %s48
    %s49 = sphi 0, %s46
    %s50 = sphi 0, %s49
    %s66 = sphi 0, %s50
    %s72 = sphi 0, %s74
    %s75 = sphi 0, %s72
    %s76 = sphi 0, %s75
    %s92 = sphi 0, %s76
    %s96 = sphi 0, %s96
    %s98 = sphi 0, %s96
    %s99 = sphi 0, %s98
    %s113 = sphi 0, %s99
    %s117 = sphi 0, %s117
    %s119 = sphi 0, %s117
    %s120 = sphi 0, %s119
    %s134 = sphi 0, %s120
    %s138 = sphi 0, %s138
    %s140 = sphi 0, %s138
    %s141 = sphi 0, %s140
    %s155 = sphi 0, %s141
    %s161 = sphi 0, %s163
    %s164 = sphi 0, %s161
    %s165 = sphi 0, %s164
    %s181 = sphi 0, %s165
    %s187 = sphi 0, %s189
    %s190 = sphi 0, %s187
    %s191 = sphi 0, %s190
    %s207 = sphi 0, %s191
  $region4: #{encoder_forward.4} parent=0 // loop_header_branch
    %18 = sbr.rel (%p16) target = $region8
  $region5: #{encoder_forward.4} parent=0 // loop_body
    %s20 = ssub.s32 %s15, 1
    %s21 = ssub.s32 %s15, 2
    %s22 = sadd.s32 %s15, 1
    %s24 = sadd.s32 %s23, 1
    %p27 = scmp.eq.s32.totalorder %s15, 1
    %p28 = scmp.ne.s32.totalorder %s23, %s25
    %p29 = scmp.eq.s32.totalorder %s15, 0
    %p30 = por %p28, %p29
    %p31 = scmp.ne.s32.totalorder %s23, %s25
    %p32 = scmp.eq.s32.totalorder %s20, 1
    %p33 = por %p31, %p32
    %p34 = scmp.ne.s32.totalorder %s25, %s26
    %p35 = scmp.eq.s32.totalorder %s20, 0
    %p36 = por %p34, %p35
    %p37 = scmp.ne.s32.totalorder %s25, %s26
    %p38 = scmp.eq.s32.totalorder %s21, 1
    %p39 = por %p37, %p38
    %p41 = scmp.ne.s32.totalorder %s26, %s40
    %p42 = scmp.eq.s32.totalorder %s21, 0
    %p43 = por %p41, %p42
    %s44 = ssub.s32 %s15, %s22
    %p45 = scmp.eq.s32.totalorder %s44, 0
    %s47 = sadd.s32 %s46, 1
    %s48 = scalar_select %p45, %s46, %s47
    %p51 = pneg %p45
    %p52 = scmp.eq.s32.totalorder %s15, 1
    %p53 = por %p51, %p52
    %p54 = scmp.ne.s32.totalorder %s46, %s49
    %p55 = scmp.eq.s32.totalorder %s15, 0
    %p56 = por %p54, %p55
    %p57 = scmp.ne.s32.totalorder %s46, %s49
    %p58 = scmp.eq.s32.totalorder %s20, 1
    %p59 = por %p57, %p58
    %p60 = scmp.ne.s32.totalorder %s49, %s50
    %p61 = scmp.eq.s32.totalorder %s20, 0
    %p62 = por %p60, %p61
    %p63 = scmp.ne.s32.totalorder %s49, %s50
    %p64 = scmp.eq.s32.totalorder %s21, 1
    %p65 = por %p63, %p64
    %p67 = scmp.ne.s32.totalorder %s50, %s66
    %p68 = scmp.eq.s32.totalorder %s21, 0
    %p69 = por %p67, %p68
    %s70 = ssub.s32 %s15, %s22
    %p71 = scmp.eq.s32.totalorder %s70, 0
    %s73 = sadd.s32 %s72, 1
    %s74 = scalar_select %p71, %s72, %s73
    %p77 = pneg %p71
    %p78 = scmp.eq.s32.totalorder %s15, 1
    %p79 = por %p77, %p78
    %p80 = scmp.ne.s32.totalorder %s72, %s75
    %p81 = scmp.eq.s32.totalorder %s15, 0
    %p82 = por %p80, %p81
    %p83 = scmp.ne.s32.totalorder %s72, %s75
    %p84 = scmp.eq.s32.totalorder %s20, 1
    %p85 = por %p83, %p84
    %p86 = scmp.ne.s32.totalorder %s75, %s76
    %p87 = scmp.eq.s32.totalorder %s20, 0
    %p88 = por %p86, %p87
    %p89 = scmp.ne.s32.totalorder %s75, %s76
    %p90 = scmp.eq.s32.totalorder %s21, 1
    %p91 = por %p89, %p90
    %p93 = scmp.ne.s32.totalorder %s76, %s92
    %p94 = scmp.eq.s32.totalorder %s21, 0
    %p95 = por %p93, %p94
    %s97 = sadd.s32 %s96, 1
    %p100 = scmp.eq.s32.totalorder %s15, 1
    %p101 = scmp.ne.s32.totalorder %s96, %s98
    %p102 = scmp.eq.s32.totalorder %s15, 0
    %p103 = por %p101, %p102
    %p104 = scmp.ne.s32.totalorder %s96, %s98
    %p105 = scmp.eq.s32.totalorder %s20, 1
    %p106 = por %p104, %p105
    %p107 = scmp.ne.s32.totalorder %s98, %s99
    %p108 = scmp.eq.s32.totalorder %s20, 0
    %p109 = por %p107, %p108
    %p110 = scmp.ne.s32.totalorder %s98, %s99
    %p111 = scmp.eq.s32.totalorder %s21, 1
    %p112 = por %p110, %p111
    %p114 = scmp.ne.s32.totalorder %s99, %s113
    %p115 = scmp.eq.s32.totalorder %s21, 0
    %p116 = por %p114, %p115
    %s118 = sadd.s32 %s117, 1
    %p121 = scmp.eq.s32.totalorder %s15, 1
    %p122 = scmp.ne.s32.totalorder %s117, %s119
    %p123 = scmp.eq.s32.totalorder %s15, 0
    %p124 = por %p122, %p123
    %p125 = scmp.ne.s32.totalorder %s117, %s119
    %p126 = scmp.eq.s32.totalorder %s20, 1
    %p127 = por %p125, %p126
    %p128 = scmp.ne.s32.totalorder %s119, %s120
    %p129 = scmp.eq.s32.totalorder %s20, 0
    %p130 = por %p128, %p129
    %p131 = scmp.ne.s32.totalorder %s119, %s120
    %p132 = scmp.eq.s32.totalorder %s21, 1
    %p133 = por %p131, %p132
    %p135 = scmp.ne.s32.totalorder %s120, %s134
    %p136 = scmp.eq.s32.totalorder %s21, 0
    %p137 = por %p135, %p136
    %s139 = sadd.s32 %s138, 1
    %p142 = scmp.eq.s32.totalorder %s15, 1
    %p143 = scmp.ne.s32.totalorder %s138, %s140
    %p144 = scmp.eq.s32.totalorder %s15, 0
    %p145 = por %p143, %p144
    %p146 = scmp.ne.s32.totalorder %s138, %s140
    %p147 = scmp.eq.s32.totalorder %s20, 1
    %p148 = por %p146, %p147
    %p149 = scmp.ne.s32.totalorder %s140, %s141
    %p150 = scmp.eq.s32.totalorder %s20, 0
    %p151 = por %p149, %p150
    %p152 = scmp.ne.s32.totalorder %s140, %s141
    %p153 = scmp.eq.s32.totalorder %s21, 1
    %p154 = por %p152, %p153
    %p156 = scmp.ne.s32.totalorder %s141, %s155
    %p157 = scmp.eq.s32.totalorder %s21, 0
    %p158 = por %p156, %p157
    %s159 = ssub.s32 %s15, %s22
    %p160 = scmp.eq.s32.totalorder %s159, 0
    %s162 = sadd.s32 %s161, 1
    %s163 = scalar_select %p160, %s161, %s162
    %p166 = pneg %p160
    %p167 = scmp.eq.s32.totalorder %s15, 1
    %p168 = por %p166, %p167
    %p169 = scmp.ne.s32.totalorder %s161, %s164
    %p170 = scmp.eq.s32.totalorder %s15, 0
    %p171 = por %p169, %p170
    %p172 = scmp.ne.s32.totalorder %s161, %s164
    %p173 = scmp.eq.s32.totalorder %s20, 1
    %p174 = por %p172, %p173
    %p175 = scmp.ne.s32.totalorder %s164, %s165
    %p176 = scmp.eq.s32.totalorder %s20, 0
    %p177 = por %p175, %p176
    %p178 = scmp.ne.s32.totalorder %s164, %s165
    %p179 = scmp.eq.s32.totalorder %s21, 1
    %p180 = por %p178, %p179
    %p182 = scmp.ne.s32.totalorder %s165, %s181
    %p183 = scmp.eq.s32.totalorder %s21, 0
    %p184 = por %p182, %p183
    %s185 = ssub.s32 %s15, %s22
    %p186 = scmp.eq.s32.totalorder %s185, 0
    %s188 = sadd.s32 %s187, 1
    %s189 = scalar_select %p186, %s187, %s188
    %p192 = pneg %p186
    %p193 = scmp.eq.s32.totalorder %s15, 1
    %p194 = por %p192, %p193
    %p195 = scmp.ne.s32.totalorder %s187, %s190
    %p196 = scmp.eq.s32.totalorder %s15, 0
    %p197 = por %p195, %p196
    %p198 = scmp.ne.s32.totalorder %s187, %s190
    %p199 = scmp.eq.s32.totalorder %s20, 1
    %p200 = por %p198, %p199
    %p201 = scmp.ne.s32.totalorder %s190, %s191
    %p202 = scmp.eq.s32.totalorder %s20, 0
    %p203 = por %p201, %p202
    %p204 = scmp.ne.s32.totalorder %s190, %s191
    %p205 = scmp.eq.s32.totalorder %s21, 1
    %p206 = por %p204, %p205
    %p208 = scmp.ne.s32.totalorder %s191, %s207
    %p209 = scmp.eq.s32.totalorder %s21, 0
    %p210 = por %p208, %p209
    %p211 = scmp.le.s32.totalorder 1, %s15
    %p212 = scmp.lt.s32.totalorder %s15, 3
    %p213 = pnand %p211, %p212
    %p214 = pneg %p213
    // Predicated region
    $region9: #{encoder_forward.4} parent=5 // pred_check
      _
    $region10: #{encoder_forward.4} parent=5 // pred_check_branch
      %216 = sbr.rel (%p213) target = $region12
    $region11: #{encoder_forward.4} parent=5 // pred_region
      %s217 = ssub.s32 %s15, 1
      // Predicated region
      $region13: #{encoder_forward.4} parent=11 // pred_check
        %p218 = pneg %p36
      $region14: #{encoder_forward.4} parent=11 // pred_check_branch
        %220 = sbr.rel (%p218) target = $region16
      $region15: #{encoder_forward.4} parent=11 // pred_region
        _
      $region16: #{encoder_forward.4} parent=11 // pred_fallthru
        _
      // Predicated region
      $region17: #{encoder_forward.4} parent=11 // pred_check
        %p221 = pneg %p109
      $region18: #{encoder_forward.4} parent=11 // pred_check_branch
        %223 = sbr.rel (%p221) target = $region20
      $region19: #{encoder_forward.4} parent=11 // pred_region
        _
      $region20: #{encoder_forward.4} parent=11 // pred_fallthru
        _
      // Predicated region
      $region21: #{encoder_forward.4} parent=11 // pred_check
        %p224 = pneg %p130
      $region22: #{encoder_forward.4} parent=11 // pred_check_branch
        %226 = sbr.rel (%p224) target = $region24
      $region23: #{encoder_forward.4} parent=11 // pred_region
        _
      $region24: #{encoder_forward.4} parent=11 // pred_fallthru
        _
      // Predicated region
      $region25: #{encoder_forward.4} parent=11 // pred_check
        %p227 = pneg %p151
      $region26: #{encoder_forward.4} parent=11 // pred_check_branch
        %229 = sbr.rel (%p227) target = $region28
      $region27: #{encoder_forward.4} parent=11 // pred_region
        _
      $region28: #{encoder_forward.4} parent=11 // pred_fallthru
        _
    $region12: #{encoder_forward.4} parent=5 // pred_fallthru
      _
    %p230 = scmp.lt.s32.totalorder %s15, 2
    // Predicated region
    $region29: #{encoder_forward.4} parent=5 // pred_check
      %p231 = pneg %p230
    $region30: #{encoder_forward.4} parent=5 // pred_check_branch
      %233 = sbr.rel (%p231) target = $region32
    $region31: #{encoder_forward.4} parent=5 // pred_region
      // Predicated region
      $region33: #{encoder_forward.4} parent=31 // pred_check
        %p234 = pneg %p56
      $region34: #{encoder_forward.4} parent=31 // pred_check_branch
        %236 = sbr.rel (%p234) target = $region36
      $region35: #{encoder_forward.4} parent=31 // pred_region
        %s237 = smul.u32 2, %s15
        %p238 = scmp.lt.s32.totalorder %s237, 3
        %s239 = scalar_select %p238, %s237, 3
        %s240 = smul.addr %s239, 4
        %s241 = scalar_lea.vmem %s1, %s240
        %s242 = smul.u32 2, %s15
      $region36: #{encoder_forward.4} parent=31 // pred_fallthru
        _
      // Predicated region
      $region37: #{encoder_forward.4} parent=31 // pred_check
        %p243 = pneg %p82
      $region38: #{encoder_forward.4} parent=31 // pred_check_branch
        %245 = sbr.rel (%p243) target = $region40
      $region39: #{encoder_forward.4} parent=31 // pred_region
        %s246 = smul.u32 2, %s15
        %p247 = scmp.lt.s32.totalorder %s246, 3
        %s248 = scalar_select %p247, %s246, 3
        %s249 = smul.addr %s248, 4
        %s250 = scalar_lea.vmem %s2, %s249
        %s251 = smul.u32 2, %s15
      $region40: #{encoder_forward.4} parent=31 // pred_fallthru
        _
    $region32: #{encoder_forward.4} parent=5 // pred_fallthru
      _
    %p252 = scmp.le.s32.totalorder 1, %s15
    %p253 = scmp.lt.s32.totalorder %s15, 3
    %p254 = pnand %p252, %p253
    %p255 = pneg %p254
    // Predicated region
    $region41: #{encoder_forward.4} parent=5 // pred_check
      _
    $region42: #{encoder_forward.4} parent=5 // pred_check_branch
      %257 = sbr.rel (%p254) target = $region44
    $region43: #{encoder_forward.4} parent=5 // pred_region
      %s258 = ssub.s32 %s15, 1
      %p259 = pneg %p36
      %p260 = pneg %p33
      %s261 = smul.u32 2, %s20
      %p262 = scmp.lt.s32.totalorder %s261, 3
      %s263 = scalar_select %p262, %s261, 3
      %s264 = smul.addr %s263, 4
      %s265 = scalar_lea.vmem %s1, %s264
      %p266 = pneg %p62
      %p267 = pneg %p59
      %s268 = smul.u32 2, %s20
      %p269 = scmp.lt.s32.totalorder %s268, 3
      %s270 = scalar_select %p269, %s268, 3
      %s271 = smul.addr %s270, 4
      %s272 = scalar_lea.vmem %s2, %s271
      %p273 = pneg %p88
      %p274 = pneg %p85
      %p275 = pneg %p109
      %p276 = pneg %p106
      %p277 = pneg %p130
      %p278 = pneg %p127
      %p279 = pneg %p151
      %p280 = pneg %p148
      %p281 = pneg %p177
      %p282 = pneg %p174
      %s283 = smul.u32 2, %s20
      %p284 = scmp.lt.s32.totalorder %s283, 3
      %s285 = scalar_select %p284, %s283, 3
      %s286 = smul.addr %s285, 4
      %s287 = scalar_lea.vmem %s6, %s286
      %p288 = pneg %p203
      %p289 = pneg %p200
      %p290 = scmp.lt.s32.totalorder %s20, 1
      %s291 = scalar_select %p290, %s20, 1
      %s292 = smul.addr %s291, 2
      %s293 = scalar_lea.vmem %s7, %s292
      %s294 = smul.u32 2, %s20
      %p295 = scmp.lt.s32.totalorder %s294, 3
      %s296 = scalar_select %p295, %s294, 3
      %s297 = smul.addr %s296, 4
      %s298 = scalar_lea.vmem %s1, %s297
      %s299 = smul.u32 2, %s20
      %s300 = smul.u32 2, %s20
      %p301 = scmp.lt.s32.totalorder %s300, 3
      %s302 = scalar_select %p301, %s300, 3
      %s303 = smul.addr %s302, 4
      %s304 = scalar_lea.vmem %s2, %s303
      %s305 = smul.u32 2, %s20
      %s306 = smul.u32 2, %s20
      %p307 = scmp.lt.s32.totalorder %s306, 3
      %s308 = scalar_select %p307, %s306, 3
      %s309 = smul.addr %s308, 4
      %s310 = scalar_lea.vmem %s6, %s309
      %s311 = smul.u32 2, %s20
      %p312 = scmp.lt.s32.totalorder %s20, 1
      %s313 = scalar_select %p312, %s20, 1
      %s314 = smul.addr %s313, 2
      %s315 = scalar_lea.vmem %s7, %s314
      %s317 = sld [smem:[#allocation2]]
      %s318 = scvt.s32.f32 %s317
      %v319 = vld [vmem:[%s3] sm:$0x3]
      %v320 = vld [vmem:[%s3 + $0x2] sm:$0x3]
      %v321 = vld [vmem:[%s4] sm:$0x1]
      %v322 = vld [vmem:[%s4 + $0x1] sm:$0x1]
      %vm323 = vcmask 1040384
      %v324 = vsel %vm323, %v319, 0.0
      %v325 = vsel %vm323, %v320, 0.0
      %v326 = vadd.f32 %v324, %v325
      %vm327 = vcmask 1041409
      %v328 = vsel %vm327, %v319, 0.0
      %v329 = vsel %vm327, %v320, 0.0
      %v330 = vadd.f32 %v328, %v329
      %v331 = vstv %s318
      %v332 = vrcp.pop %v331
      %v333 = vmul.f32 %v326, %v332
      %v334 = vmul.f32 %v330, %v332
      %v335 = vmul.f32 %v333, %v333
      %v337 = vrot.slane %v335, 7
      %v339 = vsub.f32 %v334, %v337
      %v340 = vadd.f32 %v339, 1e-05
      %v341 = vrsqrt.pop %v340
      %v343 = vrot.slane %v341, 1
      %v345 = vmul.f32 %v321, %v343
      %v346 = vmul.f32 %v333, %v345
      %v347 = vsub.f32 %v322, %v346
      %v348 = vld [vmem:[%s298] sm:$0xf]
      %v349 = vld [vmem:[%s298 + $0x4] sm:$0xf]
      %v350 = vunpack.c.l.bf16 %v348
      %v351 = vunpack.c.l.bf16 %v349
      %v352 = vlaneseq
      %v353 = vshrl.u32 %v352, 7
      %v354 = vsub.s32 0, %v353
      %v355 = vrot.slane %v345, %v354
      %v356 = vmul.f32 %v350, %v355
      %v357 = vmul.f32 %v351, %v355
      %v358 = vlaneseq
      %v359 = vshrl.u32 %v358, 7
      %v360 = vsub.s32 0, %v359
      %v361 = vrot.slane %v347, %v360
      %v362 = vadd.f32 %v356, %v361
      %v363 = vadd.f32 %v357, %v361
      %v364 = vmul.f32 %v362, 0.2
      %v365 = vmul.f32 %v363, 0.2
      %v366 = vmax.f32 %v362, %v364
      %v367 = vmax.f32 %v363, %v365
      %v368 = vpack.c.bf16 %v367, %v366
      %v369 = vld [vmem:[%s304] sm:$0xf]
      %v370 = vld [vmem:[%s304 + $0x4] sm:$0xf]
      %v373 = vunpack.c.l.b16 %v369
      %v374 = vunpack.c.l.b16 %v370
      %v375 = vpack.c.b16 %v374, %v373
      %v377 = vld [vmem:[%s5] sm:$0xf]
      %v378 = vld [vmem:[%s5 + $0x4] sm:$0xf]
      %v379 = vld [vmem:[%s5 + $0x8] sm:$0xf]
      %v380 = vld [vmem:[%s5 + $0xc] sm:$0xf]
      %v381 = vld [vmem:[%s5 + $0x10] sm:$0xf]
      %v382 = vld [vmem:[%s5 + $0x14] sm:$0xf]
      %v383 = vld [vmem:[%s5 + $0x18] sm:$0xf]
      %v384 = vld [vmem:[%s5 + $0x1c] sm:$0xf]
      %v385 = vld [vmem:[%s5 + $0x20] sm:$0xf]
      %v386 = vld [vmem:[%s5 + $0x24] sm:$0xf]
      %v387 = vld [vmem:[%s5 + $0x28] sm:$0xf]
      %v388 = vld [vmem:[%s5 + $0x2c] sm:$0xf]
      %v389 = vld [vmem:[%s5 + $0x30] sm:$0xf]
      %v390 = vld [vmem:[%s5 + $0x34] sm:$0xf]
      %v391 = vld [vmem:[%s5 + $0x38] sm:$0xf]
      %v392 = vld [vmem:[%s5 + $0x3c] sm:$0xf]
      %v393 = vld [vmem:[%s5 + $0x40] sm:$0xf]
      %v394 = vld [vmem:[%s5 + $0x44] sm:$0xf]
      %v395 = vld [vmem:[%s5 + $0x48] sm:$0xf]
      %v396 = vld [vmem:[%s5 + $0x4c] sm:$0xf]
      %v397 = vld [vmem:[%s5 + $0x50] sm:$0xf]
      %v398 = vld [vmem:[%s5 + $0x54] sm:$0xf]
      %v399 = vld [vmem:[%s5 + $0x58] sm:$0xf]
      %v400 = vld [vmem:[%s5 + $0x5c] sm:$0xf]
      %v401 = vld [vmem:[%s5 + $0x60] sm:$0xf]
      %v402 = vld [vmem:[%s5 + $0x64] sm:$0xf]
      %v403 = vld [vmem:[%s5 + $0x68] sm:$0xf]
      %v404 = vld [vmem:[%s5 + $0x6c] sm:$0xf]
      %v405 = vld [vmem:[%s5 + $0x70] sm:$0xf]
      %v406 = vld [vmem:[%s5 + $0x74] sm:$0xf]
      %v407 = vld [vmem:[%s5 + $0x78] sm:$0xf]
      %v408 = vld [vmem:[%s5 + $0x7c] sm:$0xf]
      %v409 = vld [vmem:[%s4 + $0x2] sm:$0x1]
      %v410 = vlaneseq
      %v411 = vshrl.u32 %v410, 7
      %v412 = vsub.s32 0, %v411
      %v413 = vrot.slane %v409, %v412
      %v446 = vunpack.c.l.b16 %v377
      %v447 = vunpack.c.l.b16 %v378
      %v448 = vunpack.c.l.b16 %v379
      %v449 = vunpack.c.l.b16 %v380
      %v450 = vunpack.c.l.b16 %v381
      %v451 = vunpack.c.l.b16 %v382
      %v452 = vunpack.c.l.b16 %v383
      %v453 = vunpack.c.l.b16 %v384
      %v454 = vunpack.c.l.b16 %v385
      %v455 = vunpack.c.l.b16 %v386
      %v456 = vunpack.c.l.b16 %v387
      %v457 = vunpack.c.l.b16 %v388
      %v458 = vunpack.c.l.b16 %v389
      %v459 = vunpack.c.l.b16 %v390
      %v460 = vunpack.c.l.b16 %v391
      %v461 = vunpack.c.l.b16 %v392
      %v462 = vunpack.c.l.b16 %v393
      %v463 = vunpack.c.l.b16 %v394
      %v464 = vunpack.c.l.b16 %v395
      %v465 = vunpack.c.l.b16 %v396
      %v466 = vunpack.c.l.b16 %v397
      %v467 = vunpack.c.l.b16 %v398
      %v468 = vunpack.c.l.b16 %v399
      %v469 = vunpack.c.l.b16 %v400
      %v470 = vunpack.c.l.b16 %v401
      %v471 = vunpack.c.l.b16 %v402
      %v472 = vunpack.c.l.b16 %v403
      %v473 = vunpack.c.l.b16 %v404
      %v474 = vunpack.c.l.b16 %v405
      %v475 = vunpack.c.l.b16 %v406
      %v476 = vunpack.c.l.b16 %v407
      %v477 = vunpack.c.l.b16 %v408
      %v478 = vpack.c.b16 %v447, %v446
      %v479 = vpack.c.b16 %v449, %v448
      %v480 = vpack.c.b16 %v451, %v450
      %v481 = vpack.c.b16 %v453, %v452
      %v482 = vpack.c.b16 %v455, %v454
      %v483 = vpack.c.b16 %v457, %v456
      %v484 = vpack.c.b16 %v459, %v458
      %v485 = vpack.c.b16 %v461, %v460
      %v486 = vpack.c.b16 %v463, %v462
      %v487 = vpack.c.b16 %v465, %v464
      %v488 = vpack.c.b16 %v467, %v466
      %v489 = vpack.c.b16 %v469, %v468
      %v490 = vpack.c.b16 %v471, %v470
      %v491 = vpack.c.b16 %v473, %v472
      %v492 = vpack.c.b16 %v475, %v474
      %v493 = vpack.c.b16 %v477, %v476
      %510 = vmatprep.subr.bf16.mxu0 0
      %511 = vmatpush1.bf16.msra.mxu0 %v478
      %512 = vmatprep.subr.bf16.mxu0 0
      %513 = vmatpush1.bf16.msra.mxu0 %v479
      %514 = vmatprep.subr.bf16.mxu0 0
      %515 = vmatpush1.bf16.msra.mxu0 %v480
      %516 = vmatprep.subr.bf16.mxu0 0
      %517 = vmatpush1.bf16.msra.mxu0 %v481
      %518 = vmatprep.subr.bf16.mxu0 0
      %519 = vmatpush1.bf16.msra.mxu0 %v482
      %520 = vmatprep.subr.bf16.mxu0 0
      %521 = vmatpush1.bf16.msra.mxu0 %v483
      %522 = vmatprep.subr.bf16.mxu0 0
      %523 = vmatpush1.bf16.msra.mxu0 %v484
      %524 = vmatprep.subr.bf16.mxu0 0
      %525 = vmatpush1.bf16.msra.mxu0 %v485
      %526 = vmatprep.subr.bf16.mxu0 0
      %527 = vmatpush1.bf16.msra.mxu0 %v486
      %528 = vmatprep.subr.bf16.mxu0 0
      %529 = vmatpush1.bf16.msra.mxu0 %v487
      %530 = vmatprep.subr.bf16.mxu0 0
      %531 = vmatpush1.bf16.msra.mxu0 %v488
      %532 = vmatprep.subr.bf16.mxu0 0
      %533 = vmatpush1.bf16.msra.mxu0 %v489
      %534 = vmatprep.subr.bf16.mxu0 0
      %535 = vmatpush1.bf16.msra.mxu0 %v490
      %536 = vmatprep.subr.bf16.mxu0 0
      %537 = vmatpush1.bf16.msra.mxu0 %v491
      %538 = vmatprep.subr.bf16.mxu0 0
      %539 = vmatpush1.bf16.msra.mxu0 %v492
      %540 = vmatprep.subr.bf16.mxu0 0
      %541 = vmatpush1.bf16.msra.mxu0 %v493
      %542 = vmatprep.mubr.bf16.mxu0 %v375
      %543 = vmatmul.mubr.bf16.gmra.mrb[0].mxu0 %v368
      %v544 = vpop.f32.mrb[0].mxu0
      %v545 = vadd.f32 %v413, %v544
      %v546 = vpop.f32.mrb[0].mxu0
      %v547 = vpop.f32.mrb[0].mxu0
      %v548 = vadd.f32 %v413, %v547
      %v549 = vpop.f32.mrb[0].mxu0
      %550 = vdwg.mxu0
      %v551 = vpack.c.bf16 %v548, %v545
      %v553 = vunpack.c.l.b16 %v551
      %v554 = vunpack.c.h.b16 %v551
      %v555 = vpack.c.b16 %v553, %v553
      %v556 = vpack.c.b16 %v554, %v554
      %559 = vst [vmem:[%s310] sm:$0xf] %v555
      %560 = vst [vmem:[%s310 + $0x4] sm:$0xf] %v556
      %s561 = sld [smem:[#allocation2]]
      %s562 = smul.u32 %s20, 16
      %v563 = vlaneseq
      %v564 = vshrl.u32 %v563, 7
      %v565 = vadd.s32 %v564, 8
      %v566 = vstv %s562
      %v567 = vadd.s32 %v566, %v564
      %v568 = vadd.s32 %v566, %v565
      %v569 = vstv %s561
      %vm570 = vcmp.lt.s32.totalorder %v567, %v569
      %vm571 = vcmp.lt.s32.totalorder %v568, %v569
      %v572 = vsel %vm570, 1, 0
      %v573 = vsel %vm571, 1, 0
      %vm574 = vcmp.eq.s32.totalorder %v572, 1
      %vm575 = vcmp.eq.s32.totalorder %v573, 1
      %v576 = vsel %vm574, %v545, 0.0
      %v577 = vsel %vm575, %v548, 0.0
      %v578 = vadd.f32 %v576, %v577
      %v579 = vrot.slane %v578, 4
      %v580 = vadd.f32 %v578, %v579
      %v581 = vrot.slane %v580, 2
      %v582 = vadd.f32 %v580, %v581
      %v583 = vrot.slane %v582, 1
      %v584 = vadd.f32 %v582, %v583
      %v585 = vmul.f32 %v576, %v576
      %v586 = vmul.f32 %v577, %v577
      %v587 = vadd.f32 %v585, %v586
      %v588 = vrot.slane %v587, 4
      %v589 = vadd.f32 %v587, %v588
      %v590 = vrot.slane %v589, 2
      %v591 = vadd.f32 %v589, %v590
      %v592 = vrot.slane %v591, 1
      %v593 = vadd.f32 %v591, %v592
      %v594 = vsel %vm323, %v584, %v593
      %595 = vst [vmem:[%s315] sm:$0x3] %v594
      %s596 = smul.u32 2, %s20
      %p597 = scmp.lt.s32.totalorder %s596, 3
      %s598 = scalar_select %p597, %s596, 3
      %s599 = smul.addr %s598, 4
      %s600 = scalar_lea.vmem %s6, %s599
      %p601 = scmp.lt.s32.totalorder %s20, 1
      %s602 = scalar_select %p601, %s20, 1
      %s603 = smul.addr %s602, 2
      %s604 = scalar_lea.vmem %s7, %s603
      // Predicated region
      $region45: #{encoder_forward.4} parent=43 // pred_check
        %p605 = pneg %p174
      $region46: #{encoder_forward.4} parent=43 // pred_check_branch
        %607 = sbr.rel (%p605) target = $region48
      $region47: #{encoder_forward.4} parent=43 // pred_region
        %s608 = smul.u32 2, %s20
      $region48: #{encoder_forward.4} parent=43 // pred_fallthru
        _
      // Predicated region
      $region49: #{encoder_forward.4} parent=43 // pred_check
        %p609 = pneg %p200
      $region50: #{encoder_forward.4} parent=43 // pred_check_branch
        %611 = sbr.rel (%p609) target = $region52
      $region51: #{encoder_forward.4} parent=43 // pred_region
        _
      $region52: #{encoder_forward.4} parent=43 // pred_fallthru
        _
    $region44: #{encoder_forward.4} parent=5 // pred_fallthru
      _
    %p612 = scmp.le.s32.totalorder 2, %s15
    // Predicated region
    $region53: #{encoder_forward.4} parent=5 // pred_check
      %p613 = pneg %p612
    $region54: #{encoder_forward.4} parent=5 // pred_check_branch
      %615 = sbr.rel (%p613) target = $region56
    $region55: #{encoder_forward.4} parent=5 // pred_region
      %s616 = ssub.s32 %s15, 2
      // Predicated region
      $region57: #{encoder_forward.4} parent=55 // pred_check
        %p617 = pneg %p180
      $region58: #{encoder_forward.4} parent=55 // pred_check_branch
        %619 = sbr.rel (%p617) target = $region60
      $region59: #{encoder_forward.4} parent=55 // pred_region
        %s620 = smul.u32 2, %s21
        %p621 = scmp.lt.s32.totalorder %s620, 3
        %s622 = scalar_select %p621, %s620, 3
        %s623 = smul.addr %s622, 4
        %s624 = scalar_lea.vmem %s6, %s623
      $region60: #{encoder_forward.4} parent=55 // pred_fallthru
        _
      // Predicated region
      $region61: #{encoder_forward.4} parent=55 // pred_check
        %p625 = pneg %p206
      $region62: #{encoder_forward.4} parent=55 // pred_check_branch
        %627 = sbr.rel (%p625) target = $region64
      $region63: #{encoder_forward.4} parent=55 // pred_region
        %p628 = scmp.lt.s32.totalorder %s21, 1
        %s629 = scalar_select %p628, %s21, 1
        %s630 = smul.addr %s629, 2
        %s631 = scalar_lea.vmem %s7, %s630
      $region64: #{encoder_forward.4} parent=55 // pred_fallthru
        _
    $region56: #{encoder_forward.4} parent=5 // pred_fallthru
      _
  $region6: #{encoder_forward.4} parent=0 // loop_footer
    %s19 = sadd.s32 1, %s15
  $region7: #{encoder_forward.4} parent=0 // loop_footer_branch
    %14 = sbr.rel target = $region3
  $region8: #{encoder_forward.4} parent=0 // loop_exit
    _

// kernel: encoder_forward.5
$region0: #{encoder_forward.5}
  #allocation0 [shape = 'u32[]', space=smem, size = 0x4, offset = 0x4, fixed_abs, tag = 'smem constant byte address 0x4 - core index']
  #allocation1 [shape = 'u32[144,128]{1,0:T(1,128)}', space=vmem, size = 0x12000, scoped, tag = 'internal scratch']
  #allocation2 [shape = 's32[1]{0:T(128)S(6)}', space=smem, size = 0x200, scoped, tag = 'scoped memory for encoder_forward.5']
  %s0 = inlined_call_operand.<no memory space> [shape: s32[1], index: 0, kind: input, shape index: {}]
  %s1 = inlined_call_operand.vmem [shape: bf16[32,128], index: 1, kind: input, shape index: {}]
  %s2 = inlined_call_operand.vmem [shape: bf16[32,128], index: 2, kind: input, shape index: {}]
  %s3 = inlined_call_operand.vmem [shape: f32[2,2,128], index: 3, kind: input, shape index: {}]
  %s4 = inlined_call_operand.vmem [shape: f32[3,128], index: 4, kind: input, shape index: {}]
  %s5 = inlined_call_operand.vmem [shape: bf16[256,128], index: 5, kind: input, shape index: {}]
  %s6 = inlined_call_operand.vmem [shape: f32[32,128], index: 6, kind: output, shape index: {}]
  %s7 = sld [smem:[#allocation0]]
  $region57: #{encoder_forward.5} parent=0
    _
  %s9 = ssub.s32 1, %s7
  %s10 = scalar_select 0, %s9, %s7
  %11 = sst [smem:[#allocation2]] %s0
  loop: start=0, step=1, limit=4
  $region2: #{encoder_forward.5} parent=0 // loop_pre_header
    _
  $region3: #{encoder_forward.5} parent=0 // loop_header
    %s13 = sphi 0, %s17
    %p14 = scmp.ge.s32.totalorder %s13, 4
    %s21 = sphi 0, %s21
    %s23 = sphi 0, %s21
    %s24 = sphi 0, %s23
    %s38 = sphi 0, %s24
    %s44 = sphi 0, %s46
    %s47 = sphi 0, %s44
    %s48 = sphi 0, %s47
    %s64 = sphi 0, %s48
    %s70 = sphi 0, %s72
    %s73 = sphi 0, %s70
    %s74 = sphi 0, %s73
    %s90 = sphi 0, %s74
    %s94 = sphi 0, %s94
    %s96 = sphi 0, %s94
    %s97 = sphi 0, %s96
    %s111 = sphi 0, %s97
    %s115 = sphi 0, %s115
    %s117 = sphi 0, %s115
    %s118 = sphi 0, %s117
    %s132 = sphi 0, %s118
    %s136 = sphi 0, %s136
    %s138 = sphi 0, %s136
    %s139 = sphi 0, %s138
    %s153 = sphi 0, %s139
    %s159 = sphi 0, %s161
    %s162 = sphi 0, %s159
    %s163 = sphi 0, %s162
    %s179 = sphi 0, %s163
  $region4: #{encoder_forward.5} parent=0 // loop_header_branch
    %16 = sbr.rel (%p14) target = $region8
  $region5: #{encoder_forward.5} parent=0 // loop_body
    %s18 = ssub.s32 %s13, 1
    %s19 = ssub.s32 %s13, 2
    %s20 = sadd.s32 %s13, 1
    %s22 = sadd.s32 %s21, 1
    %p25 = scmp.eq.s32.totalorder %s13, 1
    %p26 = scmp.ne.s32.totalorder %s21, %s23
    %p27 = scmp.eq.s32.totalorder %s13, 0
    %p28 = por %p26, %p27
    %p29 = scmp.ne.s32.totalorder %s21, %s23
    %p30 = scmp.eq.s32.totalorder %s18, 1
    %p31 = por %p29, %p30
    %p32 = scmp.ne.s32.totalorder %s23, %s24
    %p33 = scmp.eq.s32.totalorder %s18, 0
    %p34 = por %p32, %p33
    %p35 = scmp.ne.s32.totalorder %s23, %s24
    %p36 = scmp.eq.s32.totalorder %s19, 1
    %p37 = por %p35, %p36
    %p39 = scmp.ne.s32.totalorder %s24, %s38
    %p40 = scmp.eq.s32.totalorder %s19, 0
    %p41 = por %p39, %p40
    %s42 = ssub.s32 %s13, %s20
    %p43 = scmp.eq.s32.totalorder %s42, 0
    %s45 = sadd.s32 %s44, 1
    %s46 = scalar_select %p43, %s44, %s45
    %p49 = pneg %p43
    %p50 = scmp.eq.s32.totalorder %s13, 1
    %p51 = por %p49, %p50
    %p52 = scmp.ne.s32.totalorder %s44, %s47
    %p53 = scmp.eq.s32.totalorder %s13, 0
    %p54 = por %p52, %p53
    %p55 = scmp.ne.s32.totalorder %s44, %s47
    %p56 = scmp.eq.s32.totalorder %s18, 1
    %p57 = por %p55, %p56
    %p58 = scmp.ne.s32.totalorder %s47, %s48
    %p59 = scmp.eq.s32.totalorder %s18, 0
    %p60 = por %p58, %p59
    %p61 = scmp.ne.s32.totalorder %s47, %s48
    %p62 = scmp.eq.s32.totalorder %s19, 1
    %p63 = por %p61, %p62
    %p65 = scmp.ne.s32.totalorder %s48, %s64
    %p66 = scmp.eq.s32.totalorder %s19, 0
    %p67 = por %p65, %p66
    %s68 = ssub.s32 %s13, %s20
    %p69 = scmp.eq.s32.totalorder %s68, 0
    %s71 = sadd.s32 %s70, 1
    %s72 = scalar_select %p69, %s70, %s71
    %p75 = pneg %p69
    %p76 = scmp.eq.s32.totalorder %s13, 1
    %p77 = por %p75, %p76
    %p78 = scmp.ne.s32.totalorder %s70, %s73
    %p79 = scmp.eq.s32.totalorder %s13, 0
    %p80 = por %p78, %p79
    %p81 = scmp.ne.s32.totalorder %s70, %s73
    %p82 = scmp.eq.s32.totalorder %s18, 1
    %p83 = por %p81, %p82
    %p84 = scmp.ne.s32.totalorder %s73, %s74
    %p85 = scmp.eq.s32.totalorder %s18, 0
    %p86 = por %p84, %p85
    %p87 = scmp.ne.s32.totalorder %s73, %s74
    %p88 = scmp.eq.s32.totalorder %s19, 1
    %p89 = por %p87, %p88
    %p91 = scmp.ne.s32.totalorder %s74, %s90
    %p92 = scmp.eq.s32.totalorder %s19, 0
    %p93 = por %p91, %p92
    %s95 = sadd.s32 %s94, 1
    %p98 = scmp.eq.s32.totalorder %s13, 1
    %p99 = scmp.ne.s32.totalorder %s94, %s96
    %p100 = scmp.eq.s32.totalorder %s13, 0
    %p101 = por %p99, %p100
    %p102 = scmp.ne.s32.totalorder %s94, %s96
    %p103 = scmp.eq.s32.totalorder %s18, 1
    %p104 = por %p102, %p103
    %p105 = scmp.ne.s32.totalorder %s96, %s97
    %p106 = scmp.eq.s32.totalorder %s18, 0
    %p107 = por %p105, %p106
    %p108 = scmp.ne.s32.totalorder %s96, %s97
    %p109 = scmp.eq.s32.totalorder %s19, 1
    %p110 = por %p108, %p109
    %p112 = scmp.ne.s32.totalorder %s97, %s111
    %p113 = scmp.eq.s32.totalorder %s19, 0
    %p114 = por %p112, %p113
    %s116 = sadd.s32 %s115, 1
    %p119 = scmp.eq.s32.totalorder %s13, 1
    %p120 = scmp.ne.s32.totalorder %s115, %s117
    %p121 = scmp.eq.s32.totalorder %s13, 0
    %p122 = por %p120, %p121
    %p123 = scmp.ne.s32.totalorder %s115, %s117
    %p124 = scmp.eq.s32.totalorder %s18, 1
    %p125 = por %p123, %p124
    %p126 = scmp.ne.s32.totalorder %s117, %s118
    %p127 = scmp.eq.s32.totalorder %s18, 0
    %p128 = por %p126, %p127
    %p129 = scmp.ne.s32.totalorder %s117, %s118
    %p130 = scmp.eq.s32.totalorder %s19, 1
    %p131 = por %p129, %p130
    %p133 = scmp.ne.s32.totalorder %s118, %s132
    %p134 = scmp.eq.s32.totalorder %s19, 0
    %p135 = por %p133, %p134
    %s137 = sadd.s32 %s136, 1
    %p140 = scmp.eq.s32.totalorder %s13, 1
    %p141 = scmp.ne.s32.totalorder %s136, %s138
    %p142 = scmp.eq.s32.totalorder %s13, 0
    %p143 = por %p141, %p142
    %p144 = scmp.ne.s32.totalorder %s136, %s138
    %p145 = scmp.eq.s32.totalorder %s18, 1
    %p146 = por %p144, %p145
    %p147 = scmp.ne.s32.totalorder %s138, %s139
    %p148 = scmp.eq.s32.totalorder %s18, 0
    %p149 = por %p147, %p148
    %p150 = scmp.ne.s32.totalorder %s138, %s139
    %p151 = scmp.eq.s32.totalorder %s19, 1
    %p152 = por %p150, %p151
    %p154 = scmp.ne.s32.totalorder %s139, %s153
    %p155 = scmp.eq.s32.totalorder %s19, 0
    %p156 = por %p154, %p155
    %s157 = ssub.s32 %s13, %s20
    %p158 = scmp.eq.s32.totalorder %s157, 0
    %s160 = sadd.s32 %s159, 1
    %s161 = scalar_select %p158, %s159, %s160
    %p164 = pneg %p158
    %p165 = scmp.eq.s32.totalorder %s13, 1
    %p166 = por %p164, %p165
    %p167 = scmp.ne.s32.totalorder %s159, %s162
    %p168 = scmp.eq.s32.totalorder %s13, 0
    %p169 = por %p167, %p168
    %p170 = scmp.ne.s32.totalorder %s159, %s162
    %p171 = scmp.eq.s32.totalorder %s18, 1
    %p172 = por %p170, %p171
    %p173 = scmp.ne.s32.totalorder %s162, %s163
    %p174 = scmp.eq.s32.totalorder %s18, 0
    %p175 = por %p173, %p174
    %p176 = scmp.ne.s32.totalorder %s162, %s163
    %p177 = scmp.eq.s32.totalorder %s19, 1
    %p178 = por %p176, %p177
    %p180 = scmp.ne.s32.totalorder %s163, %s179
    %p181 = scmp.eq.s32.totalorder %s19, 0
    %p182 = por %p180, %p181
    %p183 = scmp.le.s32.totalorder 1, %s13
    %p184 = scmp.lt.s32.totalorder %s13, 3
    %p185 = pnand %p183, %p184
    %p186 = pneg %p185
    // Predicated region
    $region9: #{encoder_forward.5} parent=5 // pred_check
      _
    $region10: #{encoder_forward.5} parent=5 // pred_check_branch
      %188 = sbr.rel (%p185) target = $region12
    $region11: #{encoder_forward.5} parent=5 // pred_region
      %s189 = ssub.s32 %s13, 1
      // Predicated region
      $region13: #{encoder_forward.5} parent=11 // pred_check
        %p190 = pneg %p34
      $region14: #{encoder_forward.5} parent=11 // pred_check_branch
        %192 = sbr.rel (%p190) target = $region16
      $region15: #{encoder_forward.5} parent=11 // pred_region
        _
      $region16: #{encoder_forward.5} parent=11 // pred_fallthru
        _
      // Predicated region
      $region17: #{encoder_forward.5} parent=11 // pred_check
        %p193 = pneg %p107
      $region18: #{encoder_forward.5} parent=11 // pred_check_branch
        %195 = sbr.rel (%p193) target = $region20
      $region19: #{encoder_forward.5} parent=11 // pred_region
        _
      $region20: #{encoder_forward.5} parent=11 // pred_fallthru
        _
      // Predicated region
      $region21: #{encoder_forward.5} parent=11 // pred_check
        %p196 = pneg %p128
      $region22: #{encoder_forward.5} parent=11 // pred_check_branch
        %198 = sbr.rel (%p196) target = $region24
      $region23: #{encoder_forward.5} parent=11 // pred_region
        _
      $region24: #{encoder_forward.5} parent=11 // pred_fallthru
        _
      // Predicated region
      $region25: #{encoder_forward.5} parent=11 // pred_check
        %p199 = pneg %p149
      $region26: #{encoder_forward.5} parent=11 // pred_check_branch
        %201 = sbr.rel (%p199) target = $region28
      $region27: #{encoder_forward.5} parent=11 // pred_region
        _
      $region28: #{encoder_forward.5} parent=11 // pred_fallthru
        _
    $region12: #{encoder_forward.5} parent=5 // pred_fallthru
      _
    %p202 = scmp.lt.s32.totalorder %s13, 2
    // Predicated region
    $region29: #{encoder_forward.5} parent=5 // pred_check
      %p203 = pneg %p202
    $region30: #{encoder_forward.5} parent=5 // pred_check_branch
      %205 = sbr.rel (%p203) target = $region32
    $region31: #{encoder_forward.5} parent=5 // pred_region
      // Predicated region
      $region33: #{encoder_forward.5} parent=31 // pred_check
        %p206 = pneg %p54
      $region34: #{encoder_forward.5} parent=31 // pred_check_branch
        %208 = sbr.rel (%p206) target = $region36
      $region35: #{encoder_forward.5} parent=31 // pred_region
        %s209 = smul.u32 2, %s13
        %p210 = scmp.lt.s32.totalorder %s209, 3
        %s211 = scalar_select %p210, %s209, 3
        %s212 = smul.addr %s211, 4
        %s213 = scalar_lea.vmem %s1, %s212
        %s214 = smul.u32 2, %s13
      $region36: #{encoder_forward.5} parent=31 // pred_fallthru
        _
      // Predicated region
      $region37: #{encoder_forward.5} parent=31 // pred_check
        %p215 = pneg %p80
      $region38: #{encoder_forward.5} parent=31 // pred_check_branch
        %217 = sbr.rel (%p215) target = $region40
      $region39: #{encoder_forward.5} parent=31 // pred_region
        %s218 = smul.u32 2, %s13
        %p219 = scmp.lt.s32.totalorder %s218, 3
        %s220 = scalar_select %p219, %s218, 3
        %s221 = smul.addr %s220, 4
        %s222 = scalar_lea.vmem %s2, %s221
        %s223 = smul.u32 2, %s13
      $region40: #{encoder_forward.5} parent=31 // pred_fallthru
        _
    $region32: #{encoder_forward.5} parent=5 // pred_fallthru
      _
    %p224 = scmp.le.s32.totalorder 1, %s13
    %p225 = scmp.lt.s32.totalorder %s13, 3
    %p226 = pnand %p224, %p225
    %p227 = pneg %p226
    // Predicated region
    $region41: #{encoder_forward.5} parent=5 // pred_check
      _
    $region42: #{encoder_forward.5} parent=5 // pred_check_branch
      %229 = sbr.rel (%p226) target = $region44
    $region43: #{encoder_forward.5} parent=5 // pred_region
      %s230 = ssub.s32 %s13, 1
      %p231 = pneg %p34
      %p232 = pneg %p31
      %s233 = smul.u32 2, %s18
      %p234 = scmp.lt.s32.totalorder %s233, 3
      %s235 = scalar_select %p234, %s233, 3
      %s236 = smul.addr %s235, 4
      %s237 = scalar_lea.vmem %s1, %s236
      %p238 = pneg %p60
      %p239 = pneg %p57
      %s240 = smul.u32 2, %s18
      %p241 = scmp.lt.s32.totalorder %s240, 3
      %s242 = scalar_select %p241, %s240, 3
      %s243 = smul.addr %s242, 4
      %s244 = scalar_lea.vmem %s2, %s243
      %p245 = pneg %p86
      %p246 = pneg %p83
      %p247 = pneg %p107
      %p248 = pneg %p104
      %p249 = pneg %p128
      %p250 = pneg %p125
      %p251 = pneg %p149
      %p252 = pneg %p146
      %p253 = pneg %p175
      %p254 = pneg %p172
      %s255 = smul.u32 2, %s18
      %p256 = scmp.lt.s32.totalorder %s255, 3
      %s257 = scalar_select %p256, %s255, 3
      %s258 = smul.addr %s257, 8
      %s259 = scalar_lea.vmem %s6, %s258
      %s260 = smul.u32 2, %s18
      %p261 = scmp.lt.s32.totalorder %s260, 3
      %s262 = scalar_select %p261, %s260, 3
      %s263 = smul.addr %s262, 4
      %s264 = scalar_lea.vmem %s1, %s263
      %s265 = smul.u32 2, %s18
      %s266 = smul.u32 2, %s18
      %p267 = scmp.lt.s32.totalorder %s266, 3
      %s268 = scalar_select %p267, %s266, 3
      %s269 = smul.addr %s268, 4
      %s270 = scalar_lea.vmem %s2, %s269
      %s271 = smul.u32 2, %s18
      %s272 = smul.u32 2, %s18
      %p273 = scmp.lt.s32.totalorder %s272, 3
      %s274 = scalar_select %p273, %s272, 3
      %s275 = smul.addr %s274, 8
      %s276 = scalar_lea.vmem %s6, %s275
      %s277 = smul.u32 2, %s18
      %s279 = sld [smem:[#allocation2]]
      %s280 = scvt.s32.f32 %s279
      %v281 = vld [vmem:[%s3] sm:$0x3]
      %v282 = vld [vmem:[%s3 + $0x2] sm:$0x3]
      %v283 = vld [vmem:[%s4] sm:$0x1]
      %v284 = vld [vmem:[%s4 + $0x1] sm:$0x1]
      %vm285 = vcmask 1040384
      %v286 = vsel %vm285, %v281, 0.0
      %v287 = vsel %vm285, %v282, 0.0
      %v288 = vadd.f32 %v286, %v287
      %vm289 = vcmask 1041409
      %v290 = vsel %vm289, %v281, 0.0
      %v291 = vsel %vm289, %v282, 0.0
      %v292 = vadd.f32 %v290, %v291
      %v293 = vstv %s280
      %v294 = vrcp.pop %v293
      %v295 = vmul.f32 %v288, %v294
      %v296 = vmul.f32 %v292, %v294
      %v297 = vmul.f32 %v295, %v295
      %v299 = vrot.slane %v297, 7
      %v301 = vsub.f32 %v296, %v299
      %v302 = vadd.f32 %v301, 1e-05
      %v303 = vrsqrt.pop %v302
      %v305 = vrot.slane %v303, 1
      %v307 = vmul.f32 %v283, %v305
      %v308 = vmul.f32 %v295, %v307
      %v309 = vsub.f32 %v284, %v308
      %v310 = vld [vmem:[%s264] sm:$0xf]
      %v311 = vld [vmem:[%s264 + $0x4] sm:$0xf]
      %v312 = vunpack.c.l.bf16 %v310
      %v313 = vunpack.c.l.bf16 %v311
      %v314 = vlaneseq
      %v315 = vshrl.u32 %v314, 7
      %v316 = vsub.s32 0, %v315
      %v317 = vrot.slane %v307, %v316
      %v318 = vmul.f32 %v312, %v317
      %v319 = vmul.f32 %v313, %v317
      %v320 = vlaneseq
      %v321 = vshrl.u32 %v320, 7
      %v322 = vsub.s32 0, %v321
      %v323 = vrot.slane %v309, %v322
      %v324 = vadd.f32 %v318, %v323
      %v325 = vadd.f32 %v319, %v323
      %v326 = vmul.f32 %v324, 0.2
      %v327 = vmul.f32 %v325, 0.2
      %v328 = vmax.f32 %v324, %v326
      %v329 = vmax.f32 %v325, %v327
      %v330 = vpack.c.bf16 %v329, %v328
      %v331 = vld [vmem:[%s270] sm:$0xf]
      %v332 = vld [vmem:[%s270 + $0x4] sm:$0xf]
      %v335 = vunpack.c.l.b16 %v331
      %v336 = vunpack.c.l.b16 %v332
      %v337 = vpack.c.b16 %v336, %v335
      %v339 = vld [vmem:[%s5] sm:$0xf]
      %v340 = vld [vmem:[%s5 + $0x4] sm:$0xf]
      %v341 = vld [vmem:[%s5 + $0x8] sm:$0xf]
      %v342 = vld [vmem:[%s5 + $0xc] sm:$0xf]
      %v343 = vld [vmem:[%s5 + $0x10] sm:$0xf]
      %v344 = vld [vmem:[%s5 + $0x14] sm:$0xf]
      %v345 = vld [vmem:[%s5 + $0x18] sm:$0xf]
      %v346 = vld [vmem:[%s5 + $0x1c] sm:$0xf]
      %v347 = vld [vmem:[%s5 + $0x20] sm:$0xf]
      %v348 = vld [vmem:[%s5 + $0x24] sm:$0xf]
      %v349 = vld [vmem:[%s5 + $0x28] sm:$0xf]
      %v350 = vld [vmem:[%s5 + $0x2c] sm:$0xf]
      %v351 = vld [vmem:[%s5 + $0x30] sm:$0xf]
      %v352 = vld [vmem:[%s5 + $0x34] sm:$0xf]
      %v353 = vld [vmem:[%s5 + $0x38] sm:$0xf]
      %v354 = vld [vmem:[%s5 + $0x3c] sm:$0xf]
      %v355 = vld [vmem:[%s5 + $0x40] sm:$0xf]
      %v356 = vld [vmem:[%s5 + $0x44] sm:$0xf]
      %v357 = vld [vmem:[%s5 + $0x48] sm:$0xf]
      %v358 = vld [vmem:[%s5 + $0x4c] sm:$0xf]
      %v359 = vld [vmem:[%s5 + $0x50] sm:$0xf]
      %v360 = vld [vmem:[%s5 + $0x54] sm:$0xf]
      %v361 = vld [vmem:[%s5 + $0x58] sm:$0xf]
      %v362 = vld [vmem:[%s5 + $0x5c] sm:$0xf]
      %v363 = vld [vmem:[%s5 + $0x60] sm:$0xf]
      %v364 = vld [vmem:[%s5 + $0x64] sm:$0xf]
      %v365 = vld [vmem:[%s5 + $0x68] sm:$0xf]
      %v366 = vld [vmem:[%s5 + $0x6c] sm:$0xf]
      %v367 = vld [vmem:[%s5 + $0x70] sm:$0xf]
      %v368 = vld [vmem:[%s5 + $0x74] sm:$0xf]
      %v369 = vld [vmem:[%s5 + $0x78] sm:$0xf]
      %v370 = vld [vmem:[%s5 + $0x7c] sm:$0xf]
      %v371 = vld [vmem:[%s4 + $0x2] sm:$0x1]
      %v372 = vlaneseq
      %v373 = vshrl.u32 %v372, 7
      %v374 = vsub.s32 0, %v373
      %v375 = vrot.slane %v371, %v374
      %v408 = vunpack.c.l.b16 %v339
      %v409 = vunpack.c.l.b16 %v340
      %v410 = vunpack.c.l.b16 %v341
      %v411 = vunpack.c.l.b16 %v342
      %v412 = vunpack.c.l.b16 %v343
      %v413 = vunpack.c.l.b16 %v344
      %v414 = vunpack.c.l.b16 %v345
      %v415 = vunpack.c.l.b16 %v346
      %v416 = vunpack.c.l.b16 %v347
      %v417 = vunpack.c.l.b16 %v348
      %v418 = vunpack.c.l.b16 %v349
      %v419 = vunpack.c.l.b16 %v350
      %v420 = vunpack.c.l.b16 %v351
      %v421 = vunpack.c.l.b16 %v352
      %v422 = vunpack.c.l.b16 %v353
      %v423 = vunpack.c.l.b16 %v354
      %v424 = vunpack.c.l.b16 %v355
      %v425 = vunpack.c.l.b16 %v356
      %v426 = vunpack.c.l.b16 %v357
      %v427 = vunpack.c.l.b16 %v358
      %v428 = vunpack.c.l.b16 %v359
      %v429 = vunpack.c.l.b16 %v360
      %v430 = vunpack.c.l.b16 %v361
      %v431 = vunpack.c.l.b16 %v362
      %v432 = vunpack.c.l.b16 %v363
      %v433 = vunpack.c.l.b16 %v364
      %v434 = vunpack.c.l.b16 %v365
      %v435 = vunpack.c.l.b16 %v366
      %v436 = vunpack.c.l.b16 %v367
      %v437 = vunpack.c.l.b16 %v368
      %v438 = vunpack.c.l.b16 %v369
      %v439 = vunpack.c.l.b16 %v370
      %v440 = vpack.c.b16 %v409, %v408
      %v441 = vpack.c.b16 %v411, %v410
      %v442 = vpack.c.b16 %v413, %v412
      %v443 = vpack.c.b16 %v415, %v414
      %v444 = vpack.c.b16 %v417, %v416
      %v445 = vpack.c.b16 %v419, %v418
      %v446 = vpack.c.b16 %v421, %v420
      %v447 = vpack.c.b16 %v423, %v422
      %v448 = vpack.c.b16 %v425, %v424
      %v449 = vpack.c.b16 %v427, %v426
      %v450 = vpack.c.b16 %v429, %v428
      %v451 = vpack.c.b16 %v431, %v430
      %v452 = vpack.c.b16 %v433, %v432
      %v453 = vpack.c.b16 %v435, %v434
      %v454 = vpack.c.b16 %v437, %v436
      %v455 = vpack.c.b16 %v439, %v438
      %472 = vmatprep.subr.bf16.mxu0 0
      %473 = vmatpush1.bf16.msra.mxu0 %v440
      %474 = vmatprep.subr.bf16.mxu0 0
      %475 = vmatpush1.bf16.msra.mxu0 %v441
      %476 = vmatprep.subr.bf16.mxu0 0
      %477 = vmatpush1.bf16.msra.mxu0 %v442
      %478 = vmatprep.subr.bf16.mxu0 0
      %479 = vmatpush1.bf16.msra.mxu0 %v443
      %480 = vmatprep.subr.bf16.mxu0 0
      %481 = vmatpush1.bf16.msra.mxu0 %v444
      %482 = vmatprep.subr.bf16.mxu0 0
      %483 = vmatpush1.bf16.msra.mxu0 %v445
      %484 = vmatprep.subr.bf16.mxu0 0
      %485 = vmatpush1.bf16.msra.mxu0 %v446
      %486 = vmatprep.subr.bf16.mxu0 0
      %487 = vmatpush1.bf16.msra.mxu0 %v447
      %488 = vmatprep.subr.bf16.mxu0 0
      %489 = vmatpush1.bf16.msra.mxu0 %v448
      %490 = vmatprep.subr.bf16.mxu0 0
      %491 = vmatpush1.bf16.msra.mxu0 %v449
      %492 = vmatprep.subr.bf16.mxu0 0
      %493 = vmatpush1.bf16.msra.mxu0 %v450
      %494 = vmatprep.subr.bf16.mxu0 0
      %495 = vmatpush1.bf16.msra.mxu0 %v451
      %496 = vmatprep.subr.bf16.mxu0 0
      %497 = vmatpush1.bf16.msra.mxu0 %v452
      %498 = vmatprep.subr.bf16.mxu0 0
      %499 = vmatpush1.bf16.msra.mxu0 %v453
      %500 = vmatprep.subr.bf16.mxu0 0
      %501 = vmatpush1.bf16.msra.mxu0 %v454
      %502 = vmatprep.subr.bf16.mxu0 0
      %503 = vmatpush1.bf16.msra.mxu0 %v455
      %504 = vmatprep.mubr.bf16.mxu0 %v337
      %505 = vmatmul.mubr.bf16.gmra.mrb[0].mxu0 %v330
      %v506 = vpop.f32.mrb[0].mxu0
      %v507 = vadd.f32 %v375, %v506
      %v508 = vpop.f32.mrb[0].mxu0
      %v509 = vpop.f32.mrb[0].mxu0
      %v510 = vadd.f32 %v375, %v509
      %v511 = vpop.f32.mrb[0].mxu0
      %512 = vdwg.mxu0
      %513 = vst [vmem:[%s276] sm:$0xff] %v507
      %514 = vst [vmem:[%s276 + $0x8] sm:$0xff] %v510
      %s515 = smul.u32 2, %s18
      %p516 = scmp.lt.s32.totalorder %s515, 3
      %s517 = scalar_select %p516, %s515, 3
      %s518 = smul.addr %s517, 8
      %s519 = scalar_lea.vmem %s6, %s518
      // Predicated region
      $region45: #{encoder_forward.5} parent=43 // pred_check
        %p520 = pneg %p172
      $region46: #{encoder_forward.5} parent=43 // pred_check_branch
        %522 = sbr.rel (%p520) target = $region48
      $region47: #{encoder_forward.5} parent=43 // pred_region
        %s523 = smul.u32 2, %s18
      $region48: #{encoder_forward.5} parent=43 // pred_fallthru
        _
    $region44: #{encoder_forward.5} parent=5 // pred_fallthru
      _
    %p524 = scmp.le.s32.totalorder 2, %s13
    // Predicated region
    $region49: #{encoder_forward.5} parent=5 // pred_check
      %p525 = pneg %p524
    $region50: #{encoder_forward.5} parent=5 // pred_check_branch
      %527 = sbr.rel (%p525) target = $region52
    $region51: #{encoder_forward.5} parent=5 // pred_region
      %s528 = ssub.s32 %s13, 2
      // Predicated region
      $region53: #{encoder_forward.5} parent=51 // pred_check
        %p529 = pneg %p178
      $region54: #{encoder_forward.5} parent=51 // pred_check_branch
        %531 = sbr.rel (%p529) target = $region56
      $region55: #{encoder_forward.5} parent=51 // pred_region
        %s532 = smul.u32 2, %s19
        %p533 = scmp.lt.s32.totalorder %s532, 3
        %s534 = scalar_select %p533, %s532, 3
        %s535 = smul.addr %s534, 8
        %s536 = scalar_lea.vmem %s6, %s535
      $region56: #{encoder_forward.5} parent=51 // pred_fallthru
        _
    $region52: #{encoder_forward.5} parent=5 // pred_fallthru
      _
  $region6: #{encoder_forward.5} parent=0 // loop_footer
    %s17 = sadd.s32 1, %s13
  $region7: #{encoder_forward.5} parent=0 // loop_footer_branch
    %12 = sbr.rel target = $region3
  $region8: #{encoder_forward.5} parent=0 // loop_exit
    _

</llo_original>
